<compile_context>
chip_gen: v7x
topology: tpu7x:2x2x1
jax: 0.10.0
libtpu: 0.0.40
codegen_flags: <defaults>
</compile_context>

<pallas_src>
import numpy as np
import jax
import jax.numpy as jnp
from jax.experimental import pallas as pl
from jax.experimental.pallas import tpu as pltpu

# ----------------------------- model hyperparams ---------------------------
SEQ_LEN = 8        # seq_length  == Conv1d in-channels
INPUT_SIZE = 16    # input_size  == Conv1d spatial length
FFNN_INPUT = 32    # ffnn_input
C1_OUT = 8         # first 1x1 conv out channels
C2_OUT = 4         # second 1x1 conv out channels
H_FFNN = 512
H_CLS = 512
EPS = 1e-5         # BatchNorm eps
# note: hidden_size / num_layers are stored by the module but unused in forward.

DS = INPUT_SIZE * SEQ_LEN      # 128  width of the transposed conv input
DC1 = INPUT_SIZE * C1_OUT      # 128  width of conv layer-1 features (d-major)
DC2 = INPUT_SIZE * C2_OUT      # 64   width of conv layer-2 features (d-major)
CLS_IN = 5 * INPUT_SIZE + 256 + FFNN_INPUT   # 368 classifier-L1 fan-in
XIN_W = DS + FFNN_INPUT + INPUT_SIZE         # 176 packed activation width


def relu(x):
    return jnp.maximum(x, 0.0)


def _round_up(x, m):
    return ((x + m - 1) // m) * m


# --------------------------- shared in-kernel math ---------------------------
def _conv_and_ffnn1(x_big, x2, w12, wf1, sm):
    """Conv branch (2 block-diagonal MXU matmuls, d-major) + first ffnn layer."""
    bf16, f32 = jnp.bfloat16, jnp.float32
    w1b = w12[:, :DC1]                     # (128, 128) block-diag conv1 (+BN1)
    w2b = w12[:, DC1:]                     # (128, 64)  block-diag conv2 (+BN2)
    b1b = sm[5:6, :DC1]                    # (1, 128)  conv1 bias tiled d-major
    b2b = sm[6:7, :DC2]                    # (1, 64)
    bf1 = sm[0:1, :]                       # (1, 512)
    h = relu(jnp.dot(x_big.astype(bf16), w1b, preferred_element_type=f32) + b1b)
    h = relu(jnp.dot(h.astype(bf16), w2b, preferred_element_type=f32) + b2b)    # (B, 64)
    f1 = relu(jnp.dot(x2.astype(bf16), wf1, preferred_element_type=f32) + bf1)  # (B, 512)
    return h, f1


def _ffnn_tail(f1, wf2, wf3, sm):
    """ffnn layers 2 and 3 (Dropout == identity in eval mode)."""
    bf16, f32 = jnp.bfloat16, jnp.float32
    bf2 = sm[1:2, :]                       # (1, 512)
    bf3 = sm[2:3, :256]                    # (1, 256)
    f = relu(jnp.dot(f1.astype(bf16), wf2, preferred_element_type=f32) + bf2)
    f = jnp.dot(f.astype(bf16), wf3, preferred_element_type=f32) + bf3          # (B, 256)
    return f


def _classifier(h, f, tail, wc1, wc2, sm):
    """Merged classifier: one (B,368) matmul, L2, then a lane-reduction L3."""
    bf16, f32 = jnp.bfloat16, jnp.float32
    bc1 = sm[3:4, :]                       # (1, 512)
    bc2 = sm[4:5, :256]                    # (1, 256)
    wc3 = sm[2:3, 256:512]                 # (1, 256)  final Linear(256,1) row
    bc3 = sm[7:8, 0:1]                     # (1, 1)
    cat = jnp.concatenate([h, f, tail], axis=1)                                 # (B, 368)
    z = relu(jnp.dot(cat.astype(bf16), wc1, preferred_element_type=f32) + bc1)
    z = relu(jnp.dot(z.astype(bf16), wc2, preferred_element_type=f32) + bc2)
    # final Linear(256, 1): broadcast-multiply + lane reduction (avoid N=1 matmul)
    return jnp.sum(z * wc3, axis=-1, keepdims=True) + bc3


# ------------------- kernel A: batched grid, resident weights ----------------
def cnn_amex_grid_kernel(xin_ref, w12_ref, wf1_ref, smalls_ref,
                         wf2_ref, wf3_ref, wc1_ref, wc2_ref, out_ref):
    sm = smalls_ref[...]
    xin = xin_ref[...]
    h, f1 = _conv_and_ffnn1(xin[:, :DS], xin[:, DS:DS + FFNN_INPUT],
                            w12_ref[...], wf1_ref[...], sm)
    f = _ffnn_tail(f1, wf2_ref[...], wf3_ref[...], sm)
    out_ref[...] = _classifier(h, f, xin[:, DS:], wc1_ref[...], wc2_ref[...], sm)


# ------------- kernel B: tiny batch, manual (consolidated) DMAs --------------
def cnn_amex_small_kernel(
    xin_ref,      # (B, 176) f32 VMEM   [inp3D d-major | inp2D | inp3D[:,-1,:]]
    w12_ref,      # (128, 192) bf16 VMEM  [block-diag conv1 | block-diag conv2]
    wf1_ref,      # (32, 512) bf16 VMEM
    smalls_ref,   # (8, 512) f32 VMEM   packed biases + wc3
    w512_hbm,     # (512, 1024) bf16 HBM (pl.ANY)  [wf2 | wf3 | wc2]
    wc1_hbm,      # (368, 512) bf16 HBM (pl.ANY)  merged classifier L1
    out_ref,      # (B, 1) f32 VMEM
    # scratch
    w512_v, wc1_v, sem,
):
    # Kick off both big-weight HBM->VMEM DMAs immediately so they overlap the
    # conv branch + first ffnn layer (this path is DMA/latency bound).
    cp_a = pltpu.make_async_copy(w512_hbm, w512_v, sem.at[0]); cp_a.start()
    cp_b = pltpu.make_async_copy(wc1_hbm, wc1_v, sem.at[1]); cp_b.start()

    sm = smalls_ref[...]
    xin = xin_ref[...]
    h, f1 = _conv_and_ffnn1(xin[:, :DS], xin[:, DS:DS + FFNN_INPUT],
                            w12_ref[...], wf1_ref[...], sm)
    cp_a.wait()
    f = _ffnn_tail(f1, w512_v[:, :H_FFNN], w512_v[:, H_FFNN:H_FFNN + 256], sm)
    cp_b.wait()
    out_ref[...] = _classifier(h, f, xin[:, DS:],
                               wc1_v[...], w512_v[:, H_FFNN + 256:], sm)


# --------------------------------- wrappers ----------------------------------
def _pack_operands(p):
    """Parameter glue: BN folding, block-diagonal conv weights, packed smalls."""
    bf16 = jnp.bfloat16
    D = INPUT_SIZE

    # fold eval-mode BatchNorm1d into the adjacent 1x1 conv
    a1 = p["bn1_gamma"] / jnp.sqrt(p["bn1_var"] + EPS)
    c1 = p["bn1_beta"] - p["bn1_mean"] * a1
    w1_eff = p["conv1_w"] * a1[None, :]                 # (C1, S)
    b1_eff = p["conv1_b"] + p["conv1_w"] @ c1           # (C1,)
    a2 = p["bn2_gamma"] / jnp.sqrt(p["bn2_var"] + EPS)
    c2 = p["bn2_beta"] - p["bn2_mean"] * a2
    w2_eff = p["conv2_w"] * a2[None, :]                 # (C2, C1)
    b2_eff = p["conv2_b"] + p["conv2_w"] @ c2           # (C2,)

    # 1x1 convs as block-diagonal matmuls with d-major features:
    #   W1_blk[d*S+s, d'*C1+c] = I[d,d'] * w1_eff[c,s]
    eye_d = jnp.eye(D, dtype=jnp.float32)
    w1_blk = jnp.kron(eye_d, w1_eff.T)                  # (128, 128)
    w2_blk = jnp.kron(eye_d, w2_eff.T)                  # (128, 64)
    w12 = jnp.concatenate([w1_blk, w2_blk], axis=1).astype(bf16)   # (128, 192)
    b1_big = jnp.tile(b1_eff, D)                        # (128,)  index d*C1+c
    b2_big = jnp.tile(b2_eff, D)                        # (64,)   index d*C2+c

    # classifier L1: conv rows c*D+d -> d*C2+c (d-major), and tail rows permuted
    # to [inp2D | inp3D[:, -1, :]] to match the new xin packing.
    n_conv = C2_OUT * D
    wc1 = p["wc1"]
    wc1_conv = wc1[:n_conv].reshape(C2_OUT, D, H_CLS).transpose(1, 0, 2)
    wc1_conv = wc1_conv.reshape(n_conv, H_CLS)
    wc1_f = wc1[n_conv:n_conv + 256]
    wc1_last = wc1[n_conv + 256:n_conv + 256 + D]       # inp3D[:, -1, :] rows
    wc1_2d = wc1[n_conv + 256 + D:]                     # inp2D rows
    wc1_merged = jnp.concatenate([wc1_conv, wc1_f, wc1_2d, wc1_last], axis=0)

    # pack every small per-layer vector into one (8, 512) f32 operand
    smalls = jnp.zeros((8, 512), jnp.float32)
    smalls = smalls.at[0, :].set(p["bf1"])
    smalls = smalls.at[1, :].set(p["bf2"])
    smalls = smalls.at[2, 0:256].set(p["bf3"])
    smalls = smalls.at[2, 256:512].set(p["wc3"][:, 0])
    smalls = smalls.at[3, :].set(p["bc1"])
    smalls = smalls.at[4, 0:256].set(p["bc2"])
    smalls = smalls.at[5, 0:DC1].set(b1_big)
    smalls = smalls.at[6, 0:DC2].set(b2_big)
    smalls = smalls.at[7, 0].set(p["bc3"][0])

    return dict(
        w12=w12,
        wf1=p["wf1"].astype(bf16),
        smalls=smalls,
        wf2=p["wf2"].astype(bf16),
        wf3=p["wf3"].astype(bf16),
        wc1=wc1_merged.astype(bf16),
        wc2=p["wc2"].astype(bf16),
    )


def _pack_inputs(inp3D, inp2D):
    """xin = [inp3D (b, d*S+s) | inp2D | inp3D[:, -1, :]]  -> (B, 176).

    inp2D starts at lane 128 (lane-tile boundary), so the x2 slice inside the
    kernel needs no lane-offset relayout before the wf1 matmul.
    """
    B = inp3D.shape[0]
    x_big = jnp.transpose(inp3D, (0, 2, 1)).reshape(B, INPUT_SIZE * SEQ_LEN)
    return jnp.concatenate([x_big, inp2D, inp3D[:, -1, :]], axis=1)


def _forward_small(ops, xin, B):
    bf16 = jnp.bfloat16
    # one (512, 1024) operand => one DMA + one wait for wf2/wf3/wc2
    w512 = jnp.concatenate([ops["wf2"], ops["wf3"], ops["wc2"]], axis=1)
    vmem = pl.BlockSpec(memory_space=pltpu.MemorySpace.VMEM)
    hbm = pl.BlockSpec(memory_space=pl.ANY)     # big weights: manual async DMA
    return pl.pallas_call(
        cnn_amex_small_kernel,
        out_shape=jax.ShapeDtypeStruct((B, 1), jnp.float32),
        in_specs=[vmem, vmem, vmem, vmem, hbm, hbm],
        out_specs=vmem,
        scratch_shapes=[
            pltpu.VMEM((H_FFNN, H_FFNN + 512), bf16),   # [wf2 | wf3 | wc2]
            pltpu.VMEM((CLS_IN, H_CLS), bf16),          # wc1 (merged)
            pltpu.SemaphoreType.DMA((2,)),
        ],
    )(xin, ops["w12"], ops["wf1"], ops["smalls"], w512, ops["wc1"])


def _forward_batched(ops, xin, B, batch_tile):
    # batch tile: 128 by default (256 also fine on v6e/v7x); weights stay
    # resident in VMEM across all grid steps (constant index_map).
    TM = min(batch_tile, _round_up(B, 8))
    Bp = _round_up(B, TM)
    if Bp != B:
        xin = jnp.pad(xin, ((0, Bp - B), (0, 0)))
    n_tiles = Bp // TM

    def const(shape):
        return pl.BlockSpec(shape, lambda i: (0, 0))

    out = pl.pallas_call(
        cnn_amex_grid_kernel,
        out_shape=jax.ShapeDtypeStruct((Bp, 1), jnp.float32),
        grid=(n_tiles,),
        in_specs=[
            pl.BlockSpec((TM, XIN_W), lambda i: (i, 0)),   # activations, per tile
            const((DS, DC1 + DC2)),                        # w12    (128, 192)
            const((FFNN_INPUT, H_FFNN)),                   # wf1    (32, 512)
            const((8, 512)),                               # smalls
            const((H_FFNN, H_FFNN)),                       # wf2    (512, 512)
            const((H_FFNN, 256)),                          # wf3    (512, 256)
            const((CLS_IN, H_CLS)),                        # wc1    (368, 512)
            const((H_CLS, 256)),                           # wc2    (512, 256)
        ],
        out_specs=pl.BlockSpec((TM, 1), lambda i: (i, 0)),
        compiler_params=pltpu.CompilerParams(
            dimension_semantics=("parallel",)),            # both v7x TCs
    )(xin, ops["w12"], ops["wf1"], ops["smalls"],
      ops["wf2"], ops["wf3"], ops["wc1"], ops["wc2"])
    return out[:B]


def cnn_amex_forward(p, inp3D, inp2D, *, batch_tile=128):
    B = inp3D.shape[0]
    ops = _pack_operands(p)
    xin = _pack_inputs(inp3D, inp2D)
    if B <= 8:
        # per-request path: stream the weights with 2 manual DMAs overlapped
        # with the conv branch / first ffnn layer.
        return _forward_small(ops, xin, B)
    # throughput path: batch grid with resident weights.
    return _forward_batched(ops, xin, B, batch_tile)


# ------------------------- deterministic parameters -------------------------
def make_params(key):
    ks = jax.random.split(key, 24)

    def rnd(k, shape, scale):
        return jax.random.normal(k, shape, jnp.float32) * scale

    p = {}
    p["bn1_gamma"] = 1.0 + rnd(ks[0], (SEQ_LEN,), 0.1)
    p["bn1_beta"] = rnd(ks[1], (SEQ_LEN,), 0.1)
    p["bn1_mean"] = rnd(ks[2], (SEQ_LEN,), 0.1)
    p["bn1_var"] = 1.0 + jnp.abs(rnd(ks[3], (SEQ_LEN,), 0.1))
    p["conv1_w"] = rnd(ks[4], (C1_OUT, SEQ_LEN), 0.35)
    p["conv1_b"] = rnd(ks[5], (C1_OUT,), 0.1)
    p["bn2_gamma"] = 1.0 + rnd(ks[6], (C1_OUT,), 0.1)
    p["bn2_beta"] = rnd(ks[7], (C1_OUT,), 0.1)
    p["bn2_mean"] = rnd(ks[8], (C1_OUT,), 0.1)
    p["bn2_var"] = 1.0 + jnp.abs(rnd(ks[9], (C1_OUT,), 0.1))
    p["conv2_w"] = rnd(ks[10], (C2_OUT, C1_OUT), 0.35)
    p["conv2_b"] = rnd(ks[11], (C2_OUT,), 0.1)

    p["wf1"] = rnd(ks[12], (FFNN_INPUT, H_FFNN), 0.18)
    p["bf1"] = rnd(ks[13], (H_FFNN,), 0.05)
    p["wf2"] = rnd(ks[14], (H_FFNN, H_FFNN), 0.044)
    p["bf2"] = rnd(ks[15], (H_FFNN,), 0.05)
    p["wf3"] = rnd(ks[16], (H_FFNN, 256), 0.044)
    p["bf3"] = rnd(ks[17], (256,), 0.05)

    p["wc1"] = rnd(ks[18], (CLS_IN, H_CLS), 0.052)
    p["bc1"] = rnd(ks[19], (H_CLS,), 0.05)
    p["wc2"] = rnd(ks[20], (H_CLS, 256), 0.044)
    p["bc2"] = rnd(ks[21], (256,), 0.05)
    p["wc3"] = rnd(ks[22], (256, 1), 0.0625)
    p["bc3"] = rnd(ks[23], (1,), 0.05)
    return p


# --------------------------- pure-JAX reference ------------------------------
def reference_forward(p, inp3D, inp2D):
    a1 = p["bn1_gamma"] / jnp.sqrt(p["bn1_var"] + EPS)
    x = (inp3D - p["bn1_mean"][None, :, None]) * a1[None, :, None] + p["bn1_beta"][None, :, None]
    y = jnp.einsum("os,bsd->bod", p["conv1_w"], x) + p["conv1_b"][None, :, None]
    y = relu(y)
    a2 = p["bn2_gamma"] / jnp.sqrt(p["bn2_var"] + EPS)
    y = (y - p["bn2_mean"][None, :, None]) * a2[None, :, None] + p["bn2_beta"][None, :, None]
    y = jnp.einsum("po,bod->bpd", p["conv2_w"], y) + p["conv2_b"][None, :, None]
    y = relu(y)
    x1 = y.reshape(y.shape[0], -1)
    f = relu(inp2D @ p["wf1"] + p["bf1"])
    f = relu(f @ p["wf2"] + p["bf2"])
    f = f @ p["wf3"] + p["bf3"]
    cat = jnp.concatenate([x1, f, inp3D[:, -1, :], inp2D], axis=1)
    z = relu(cat @ p["wc1"] + p["bc1"])
    z = relu(z @ p["wc2"] + p["bc2"])
    return z @ p["wc3"] + p["bc3"]


if __name__ == "__main__":
    key = jax.random.PRNGKey(0)
    k3, k2, kp, k3b, k2b = jax.random.split(key, 5)
    params = make_params(kp)

    # --- small-batch / per-request path (manual consolidated DMAs) ----------
    B_small = 8
    inp3D_s = jax.random.normal(k3, (B_small, SEQ_LEN, INPUT_SIZE), jnp.float32)
    inp2D_s = jax.random.normal(k2, (B_small, FFNN_INPUT), jnp.float32)
    out_s = jax.block_until_ready(cnn_amex_forward(params, inp3D_s, inp2D_s))
    ref_s = reference_forward(params, inp3D_s, inp2D_s)
    assert out_s.shape == (B_small, 1)
    np.testing.assert_allclose(np.asarray(out_s), np.asarray(ref_s),
                               rtol=3e-2, atol=3e-2)

    # --- batched grid path (resident weights, parallel batch tiles) ---------
    B_big = 256
    inp3D_b = jax.random.normal(k3b, (B_big, SEQ_LEN, INPUT_SIZE), jnp.float32)
    inp2D_b = jax.random.normal(k2b, (B_big, FFNN_INPUT), jnp.float32)
    out_b = jax.block_until_ready(cnn_amex_forward(params, inp3D_b, inp2D_b))
    ref_b = reference_forward(params, inp3D_b, inp2D_b)
    assert out_b.shape == (B_big, 1)
    np.testing.assert_allclose(np.asarray(out_b), np.asarray(ref_b),
                               rtol=3e-2, atol=3e-2)

    print("KERNEL_OK")
</pallas_src>

<mosaic_0001>
module attributes {stable_mosaic.version = 11 : i64} {
  func.func @cnn_amex_small_kernel(%arg0: memref<8x176xf32, #tpu.memory_space<vmem>>, %arg1: memref<128x192xbf16, #tpu.memory_space<vmem>>, %arg2: memref<32x512xbf16, #tpu.memory_space<vmem>>, %arg3: memref<8x512xf32, #tpu.memory_space<vmem>>, %arg4: memref<512x1024xbf16, #tpu.memory_space<any>>, %arg5: memref<368x512xbf16, #tpu.memory_space<any>>, %arg6: memref<8x1xf32, #tpu.memory_space<vmem>>, %arg7: memref<512x1024xbf16, #tpu.memory_space<vmem>>, %arg8: memref<368x512xbf16, #tpu.memory_space<vmem>>, %arg9: memref<2x!tpu.dma_semaphore, #tpu.memory_space<semaphore_mem>>) attributes {dimension_semantics = [], scalar_prefetch = 0 : i64, scratch_operands = 3 : i64, tpu.core_type = #tpu.core_type<tc>} {
    %c0_i32 = arith.constant 0 : i32
    %0 = tpu.memref_slice %arg9[%c0_i32] : memref<2x!tpu.dma_semaphore, #tpu.memory_space<semaphore_mem>> -> memref<1x!tpu.dma_semaphore, #tpu.memory_space<semaphore_mem>>
    %1 = tpu.memref_squeeze %0 : memref<1x!tpu.dma_semaphore, #tpu.memory_space<semaphore_mem>> -> memref<!tpu.dma_semaphore, #tpu.memory_space<semaphore_mem>>
    tpu.enqueue_dma source(%arg4 : memref<512x1024xbf16, #tpu.memory_space<any>>) target(%arg7 : memref<512x1024xbf16, #tpu.memory_space<vmem>>) target_semaphore(%1 : memref<!tpu.dma_semaphore, #tpu.memory_space<semaphore_mem>>)
    %c1_i32 = arith.constant 1 : i32
    %2 = tpu.memref_slice %arg9[%c1_i32] : memref<2x!tpu.dma_semaphore, #tpu.memory_space<semaphore_mem>> -> memref<1x!tpu.dma_semaphore, #tpu.memory_space<semaphore_mem>>
    %3 = tpu.memref_squeeze %2 : memref<1x!tpu.dma_semaphore, #tpu.memory_space<semaphore_mem>> -> memref<!tpu.dma_semaphore, #tpu.memory_space<semaphore_mem>>
    tpu.enqueue_dma source(%arg5 : memref<368x512xbf16, #tpu.memory_space<any>>) target(%arg8 : memref<368x512xbf16, #tpu.memory_space<vmem>>) target_semaphore(%3 : memref<!tpu.dma_semaphore, #tpu.memory_space<semaphore_mem>>)
    %c0 = arith.constant 0 : index
    %c0_0 = arith.constant 0 : index
    %4 = vector.load %arg3[%c0, %c0_0] : memref<8x512xf32, #tpu.memory_space<vmem>>, vector<8x512xf32>
    %c0_1 = arith.constant 0 : index
    %c0_2 = arith.constant 0 : index
    %5 = vector.load %arg0[%c0_1, %c0_2] : memref<8x176xf32, #tpu.memory_space<vmem>>, vector<8x176xf32>
    %6 = vector.extract_strided_slice %5 {offsets = [0, 0], sizes = [8, 128], strides = [1, 1]} : vector<8x176xf32> to vector<8x128xf32>
    %7 = vector.extract_strided_slice %5 {offsets = [0, 128], sizes = [8, 32], strides = [1, 1]} : vector<8x176xf32> to vector<8x32xf32>
    %c0_3 = arith.constant 0 : index
    %c0_4 = arith.constant 0 : index
    %8 = vector.load %arg1[%c0_3, %c0_4] : memref<128x192xbf16, #tpu.memory_space<vmem>>, vector<128x192xbf16>
    %c0_5 = arith.constant 0 : index
    %c0_6 = arith.constant 0 : index
    %9 = vector.load %arg2[%c0_5, %c0_6] : memref<32x512xbf16, #tpu.memory_space<vmem>>, vector<32x512xbf16>
    %10 = vector.extract_strided_slice %8 {offsets = [0, 0], sizes = [128, 128], strides = [1, 1]} : vector<128x192xbf16> to vector<128x128xbf16>
    %11 = vector.extract_strided_slice %8 {offsets = [0, 128], sizes = [128, 64], strides = [1, 1]} : vector<128x192xbf16> to vector<128x64xbf16>
    %12 = vector.extract_strided_slice %4 {offsets = [5, 0], sizes = [1, 128], strides = [1, 1]} : vector<8x512xf32> to vector<1x128xf32>
    %13 = vector.extract_strided_slice %4 {offsets = [6, 0], sizes = [1, 64], strides = [1, 1]} : vector<8x512xf32> to vector<1x64xf32>
    %14 = vector.extract_strided_slice %4 {offsets = [0, 0], sizes = [1, 512], strides = [1, 1]} : vector<8x512xf32> to vector<1x512xf32>
    %15 = arith.truncf %6 : vector<8x128xf32> to vector<8x128xbf16>
    %cst = arith.constant dense<0.000000e+00> : vector<8x128xf32>
    %16 = tpu.matmul %15, %10, %cst {dimension_numbers = #tpu.dot_dimension_numbers<[1], [0], [0], [1], [0, 0, 1, 1], [], []>} : vector<8x128xbf16>, vector<128x128xbf16>, vector<8x128xf32> -> vector<8x128xf32>
    %17 = vector.broadcast %12 : vector<1x128xf32> to vector<8x128xf32>
    %18 = arith.addf %16, %17 : vector<8x128xf32>
    %cst_7 = arith.constant 0.000000e+00 : f32
    %19 = vector.broadcast %cst_7 : f32 to vector<8x128xf32>
    %20 = arith.maximumf %18, %19 : vector<8x128xf32>
    %21 = arith.truncf %20 : vector<8x128xf32> to vector<8x128xbf16>
    %cst_8 = arith.constant dense<0.000000e+00> : vector<8x64xf32>
    %22 = tpu.matmul %21, %11, %cst_8 {dimension_numbers = #tpu.dot_dimension_numbers<[1], [0], [0], [1], [0, 0, 1, 1], [], []>} : vector<8x128xbf16>, vector<128x64xbf16>, vector<8x64xf32> -> vector<8x64xf32>
    %23 = vector.broadcast %13 : vector<1x64xf32> to vector<8x64xf32>
    %24 = arith.addf %22, %23 : vector<8x64xf32>
    %cst_9 = arith.constant 0.000000e+00 : f32
    %25 = vector.broadcast %cst_9 : f32 to vector<8x64xf32>
    %26 = arith.maximumf %24, %25 : vector<8x64xf32>
    %27 = arith.truncf %7 : vector<8x32xf32> to vector<8x32xbf16>
    %cst_10 = arith.constant dense<0.000000e+00> : vector<8x512xf32>
    %28 = tpu.matmul %27, %9, %cst_10 {dimension_numbers = #tpu.dot_dimension_numbers<[1], [0], [0], [1], [0, 0, 1, 1], [], []>} : vector<8x32xbf16>, vector<32x512xbf16>, vector<8x512xf32> -> vector<8x512xf32>
    %29 = vector.broadcast %14 : vector<1x512xf32> to vector<8x512xf32>
    %30 = arith.addf %28, %29 : vector<8x512xf32>
    %cst_11 = arith.constant 0.000000e+00 : f32
    %31 = vector.broadcast %cst_11 : f32 to vector<8x512xf32>
    %32 = arith.maximumf %30, %31 : vector<8x512xf32>
    %c0_i32_12 = arith.constant 0 : i32
    %33 = tpu.memref_slice %arg9[%c0_i32_12] : memref<2x!tpu.dma_semaphore, #tpu.memory_space<semaphore_mem>> -> memref<1x!tpu.dma_semaphore, #tpu.memory_space<semaphore_mem>>
    %34 = tpu.memref_squeeze %33 : memref<1x!tpu.dma_semaphore, #tpu.memory_space<semaphore_mem>> -> memref<!tpu.dma_semaphore, #tpu.memory_space<semaphore_mem>>
    tpu.wait_dma2 semaphore(%34 : memref<!tpu.dma_semaphore, #tpu.memory_space<semaphore_mem>>) src(%arg4 : memref<512x1024xbf16, #tpu.memory_space<any>>) dst(%arg7 : memref<512x1024xbf16, #tpu.memory_space<vmem>>)
    %c0_13 = arith.constant 0 : index
    %c0_14 = arith.constant 0 : index
    %35 = vector.load %arg7[%c0_13, %c0_14] : memref<512x1024xbf16, #tpu.memory_space<vmem>>, vector<512x512xbf16>
    %c0_15 = arith.constant 0 : index
    %c512 = arith.constant 512 : index
    %36 = vector.load %arg7[%c0_15, %c512] : memref<512x1024xbf16, #tpu.memory_space<vmem>>, vector<512x256xbf16>
    %37 = vector.extract_strided_slice %4 {offsets = [1, 0], sizes = [1, 512], strides = [1, 1]} : vector<8x512xf32> to vector<1x512xf32>
    %38 = vector.extract_strided_slice %4 {offsets = [2, 0], sizes = [1, 256], strides = [1, 1]} : vector<8x512xf32> to vector<1x256xf32>
    %39 = arith.truncf %32 : vector<8x512xf32> to vector<8x512xbf16>
    %cst_16 = arith.constant dense<0.000000e+00> : vector<8x512xf32>
    %40 = tpu.matmul %39, %35, %cst_16 {dimension_numbers = #tpu.dot_dimension_numbers<[1], [0], [0], [1], [0, 0, 1, 1], [], []>} : vector<8x512xbf16>, vector<512x512xbf16>, vector<8x512xf32> -> vector<8x512xf32>
    %41 = vector.broadcast %37 : vector<1x512xf32> to vector<8x512xf32>
    %42 = arith.addf %40, %41 : vector<8x512xf32>
    %cst_17 = arith.constant 0.000000e+00 : f32
    %43 = vector.broadcast %cst_17 : f32 to vector<8x512xf32>
    %44 = arith.maximumf %42, %43 : vector<8x512xf32>
    %45 = arith.truncf %44 : vector<8x512xf32> to vector<8x512xbf16>
    %cst_18 = arith.constant dense<0.000000e+00> : vector<8x256xf32>
    %46 = tpu.matmul %45, %36, %cst_18 {dimension_numbers = #tpu.dot_dimension_numbers<[1], [0], [0], [1], [0, 0, 1, 1], [], []>} : vector<8x512xbf16>, vector<512x256xbf16>, vector<8x256xf32> -> vector<8x256xf32>
    %47 = vector.broadcast %38 : vector<1x256xf32> to vector<8x256xf32>
    %48 = arith.addf %46, %47 : vector<8x256xf32>
    %c1_i32_19 = arith.constant 1 : i32
    %49 = tpu.memref_slice %arg9[%c1_i32_19] : memref<2x!tpu.dma_semaphore, #tpu.memory_space<semaphore_mem>> -> memref<1x!tpu.dma_semaphore, #tpu.memory_space<semaphore_mem>>
    %50 = tpu.memref_squeeze %49 : memref<1x!tpu.dma_semaphore, #tpu.memory_space<semaphore_mem>> -> memref<!tpu.dma_semaphore, #tpu.memory_space<semaphore_mem>>
    tpu.wait_dma2 semaphore(%50 : memref<!tpu.dma_semaphore, #tpu.memory_space<semaphore_mem>>) src(%arg5 : memref<368x512xbf16, #tpu.memory_space<any>>) dst(%arg8 : memref<368x512xbf16, #tpu.memory_space<vmem>>)
    %51 = vector.extract_strided_slice %5 {offsets = [0, 128], sizes = [8, 48], strides = [1, 1]} : vector<8x176xf32> to vector<8x48xf32>
    %c0_20 = arith.constant 0 : index
    %c0_21 = arith.constant 0 : index
    %52 = vector.load %arg8[%c0_20, %c0_21] : memref<368x512xbf16, #tpu.memory_space<vmem>>, vector<368x512xbf16>
    %c0_22 = arith.constant 0 : index
    %c768 = arith.constant 768 : index
    %53 = vector.load %arg7[%c0_22, %c768] : memref<512x1024xbf16, #tpu.memory_space<vmem>>, vector<512x256xbf16>
    %54 = vector.extract_strided_slice %4 {offsets = [3, 0], sizes = [1, 512], strides = [1, 1]} : vector<8x512xf32> to vector<1x512xf32>
    %55 = vector.extract_strided_slice %4 {offsets = [4, 0], sizes = [1, 256], strides = [1, 1]} : vector<8x512xf32> to vector<1x256xf32>
    %56 = vector.extract_strided_slice %4 {offsets = [2, 256], sizes = [1, 256], strides = [1, 1]} : vector<8x512xf32> to vector<1x256xf32>
    %57 = vector.extract_strided_slice %4 {offsets = [7, 0], sizes = [1, 1], strides = [1, 1]} : vector<8x512xf32> to vector<1x1xf32>
    %58 = tpu.concatenate %26, %48, %51 in 1 : vector<8x64xf32>, vector<8x256xf32>, vector<8x48xf32> -> vector<8x368xf32>
    %59 = arith.truncf %58 : vector<8x368xf32> to vector<8x368xbf16>
    %cst_23 = arith.constant dense<0.000000e+00> : vector<8x512xf32>
    %60 = tpu.matmul %59, %52, %cst_23 {dimension_numbers = #tpu.dot_dimension_numbers<[1], [0], [0], [1], [0, 0, 1, 1], [], []>} : vector<8x368xbf16>, vector<368x512xbf16>, vector<8x512xf32> -> vector<8x512xf32>
    %61 = vector.broadcast %54 : vector<1x512xf32> to vector<8x512xf32>
    %62 = arith.addf %60, %61 : vector<8x512xf32>
    %cst_24 = arith.constant 0.000000e+00 : f32
    %63 = vector.broadcast %cst_24 : f32 to vector<8x512xf32>
    %64 = arith.maximumf %62, %63 : vector<8x512xf32>
    %65 = arith.truncf %64 : vector<8x512xf32> to vector<8x512xbf16>
    %cst_25 = arith.constant dense<0.000000e+00> : vector<8x256xf32>
    %66 = tpu.matmul %65, %53, %cst_25 {dimension_numbers = #tpu.dot_dimension_numbers<[1], [0], [0], [1], [0, 0, 1, 1], [], []>} : vector<8x512xbf16>, vector<512x256xbf16>, vector<8x256xf32> -> vector<8x256xf32>
    %67 = vector.broadcast %55 : vector<1x256xf32> to vector<8x256xf32>
    %68 = arith.addf %66, %67 : vector<8x256xf32>
    %cst_26 = arith.constant 0.000000e+00 : f32
    %69 = vector.broadcast %cst_26 : f32 to vector<8x256xf32>
    %70 = arith.maximumf %68, %69 : vector<8x256xf32>
    %71 = vector.broadcast %56 : vector<1x256xf32> to vector<8x256xf32>
    %72 = arith.mulf %70, %71 : vector<8x256xf32>
    %cst_27 = arith.constant dense<0.000000e+00> : vector<8xf32>
    %73 = vector.multi_reduction <add>, %72, %cst_27 [1] : vector<8x256xf32> to vector<8xf32>
    %74 = vector.shape_cast %73 : vector<8xf32> to vector<8x1xf32>
    %75 = vector.broadcast %57 : vector<1x1xf32> to vector<8x1xf32>
    %76 = arith.addf %74, %75 : vector<8x1xf32>
    %c0_28 = arith.constant 0 : index
    %c0_29 = arith.constant 0 : index
    %77 = vector.load %arg6[%c0_28, %c0_29] : memref<8x1xf32, #tpu.memory_space<vmem>>, vector<8x1xf32>
    tpu.vector_store %arg6[%c0_28, %c0_29], %76 {strides = array<i32>} : memref<8x1xf32, #tpu.memory_space<vmem>>, vector<8x1xf32>,
    return
  }
}

</mosaic_0001>

<llo_original>
// kernel: tpu_custom_call.1
$region0: #{tpu_custom_call.1}
  #allocation0 [shape = 'u32[]', space=smem, size = 0x4, offset = 0x4, fixed_abs, tag = 'smem constant byte address 0x4 - core index']
  #allocation1 [shape = 'u32[144,128]{1,0:T(1,128)}', space=vmem, size = 0x12000, scoped, tag = 'internal scratch']
  #allocation2 [shape = 'bf16[512,1024]{1,0:T(16,128)(2,1)}', space=vmem, size = 0x100000, scoped, tag = 'scratch operand']
  #allocation3 [shape = 'bf16[368,512]{1,0:T(16,128)(2,1)}', space=vmem, size = 0x5c000, scoped, tag = 'scratch operand']
  #allocation4 [shape = 's32[2]{0}', space=sflag, size = 0x8, scoped, tag = 'scratch operand']
  #allocation5 [shape = 's32[]', space=sflag, size = 0x4, offset = 0, fixed_abs, tag = 'sflag constant byte address 0x0 - dummy sync flag']
  #allocation7 [shape = 's32[]', space=sflag, size = 0x4, offset = 0, fixed_abs, tag = 'sflag constant byte address 0x0 - dummy sync flag']
  %s0 = inlined_call_operand.vmem [shape: f32[8,176], index: 0, kind: input, shape index: {}]
  %s1 = inlined_call_operand.vmem [shape: bf16[128,192], index: 1, kind: input, shape index: {}]
  %s2 = inlined_call_operand.vmem [shape: bf16[32,512], index: 2, kind: input, shape index: {}]
  %s3 = inlined_call_operand.vmem [shape: f32[8,512], index: 3, kind: input, shape index: {}]
  %s4 = inlined_call_operand.hbm [shape: bf16[512,1024], index: 4, kind: input, shape index: {}]
  %s5 = inlined_call_operand.hbm [shape: bf16[368,512], index: 5, kind: input, shape index: {}]
  %s6 = inlined_call_operand.vmem [shape: f32[8,1], index: 6, kind: output, shape index: {}]
  %s7 = sld [smem:[#allocation0]]
  $region26: #{tpu_custom_call.1} parent=0
    _
  %s9 = ssub.s32 1, %s7
  %s10 = scalar_select 0, %s9, %s7
  $region1: #{tpu_custom_call.1} parent=0
    #allocation6 [shape = 'u32[9]{0}', space=smem, size = 0x24, scoped, tag = 'DMA stride descriptor']
    #allocation8 [shape = 'u32[9]{0}', space=smem, size = 0x24, scoped, tag = 'DMA stride descriptor']
    // Predicated region
    $region2: #{tpu_custom_call.1} parent=1 // pred_check
      _
    $region3: #{tpu_custom_call.1} parent=1 // pred_check_branch
      %12 = sbr.rel (0) target = $region5
    $region4: #{tpu_custom_call.1} parent=1 // pred_region
      _
    $region5: #{tpu_custom_call.1} parent=1 // pred_fallthru
      _
    // Predicated region
    $region6: #{tpu_custom_call.1} parent=1 // pred_check
      _
    $region7: #{tpu_custom_call.1} parent=1 // pred_check_branch
      %14 = sbr.rel (0) target = $region9
    $region8: #{tpu_custom_call.1} parent=1 // pred_region
      _
    $region9: #{tpu_custom_call.1} parent=1 // pred_fallthru
      _
    // Predicated region
    $region10: #{tpu_custom_call.1} parent=1 // pred_check
      _
    $region11: #{tpu_custom_call.1} parent=1 // pred_check_branch
      %16 = sbr.rel (0) target = $region13
    $region12: #{tpu_custom_call.1} parent=1 // pred_region
      _
    $region13: #{tpu_custom_call.1} parent=1 // pred_fallthru
      _
    // Predicated region
    $region14: #{tpu_custom_call.1} parent=1 // pred_check
      _
    $region15: #{tpu_custom_call.1} parent=1 // pred_check_branch
      %18 = sbr.rel (0) target = $region17
    $region16: #{tpu_custom_call.1} parent=1 // pred_region
      _
    $region17: #{tpu_custom_call.1} parent=1 // pred_fallthru
      _
    %s21 = sshll.u32 1, 14
    %s22 = sxor.u32 4294967295, %s21
    %s24 = sld [smem:[#allocation0]]
    %s25 = sadd.s32 2, %s24
    %s27 = sshll.u32 7, 26
    %s28 = sxor.u32 4294967295, %s27
    %s29 = sand.u32 0, %s28
    %s30 = sshll.u32 %s25, 26
    %s31 = sor.u32 %s29, %s30
    %s32 = sshll.u32 [#allocation2], 4
    %s33 = int_to_ptr.vmem [resolvable:$true] %s32
    %36 = sst [smem:[#allocation6]] 1024
    %s37 = scalar_lea.smem [#allocation6], 1
    %38 = sst [smem:[%s37]] 1024
    %s39 = scalar_lea.smem [#allocation6], 2
    %40 = sst [smem:[%s39]] 8
    %s41 = scalar_lea.smem [#allocation6], 3
    %42 = sst [smem:[%s41]] 64
    %s43 = scalar_lea.smem [#allocation6], 4
    %44 = sst [smem:[%s43]] 128
    %s45 = scalar_lea.smem [#allocation6], 5
    %46 = sst [smem:[%s45]] 2
    %s47 = scalar_lea.smem [#allocation6], 6
    %48 = sst [smem:[%s47]] 512
    %s49 = scalar_lea.smem [#allocation6], 7
    %50 = sst [smem:[%s49]] 64
    %s51 = scalar_lea.smem [#allocation6], 8
    %52 = sst [smem:[%s51]] 4
    %54 = dma.general %s4, 32768, %s33, [#allocation4], [#allocation5], [#allocation6], %s31, 0
    %s55 = scalar_lea.sflag [#allocation4], 1
    %s57 = sshll.u32 1, 14
    %s58 = sxor.u32 4294967295, %s57
    %s60 = sadd.s32 2, %s24
    %s62 = sshll.u32 7, 26
    %s63 = sxor.u32 4294967295, %s62
    %s64 = sand.u32 0, %s63
    %s65 = sshll.u32 %s60, 26
    %s66 = sor.u32 %s64, %s65
    %s67 = sshll.u32 [#allocation3], 4
    %s68 = int_to_ptr.vmem [resolvable:$true] %s67
    %71 = sst [smem:[#allocation8]] 512
    %s72 = scalar_lea.smem [#allocation8], 1
    %73 = sst [smem:[%s72]] 512
    %s74 = scalar_lea.smem [#allocation8], 2
    %75 = sst [smem:[%s74]] 4
    %s76 = scalar_lea.smem [#allocation8], 3
    %77 = sst [smem:[%s76]] 64
    %s78 = scalar_lea.smem [#allocation8], 4
    %79 = sst [smem:[%s78]] 128
    %s80 = scalar_lea.smem [#allocation8], 5
    %81 = sst [smem:[%s80]] 2
    %s82 = scalar_lea.smem [#allocation8], 6
    %83 = sst [smem:[%s82]] 256
    %s84 = scalar_lea.smem [#allocation8], 7
    %85 = sst [smem:[%s84]] 64
    %s86 = scalar_lea.smem [#allocation8], 8
    %87 = sst [smem:[%s86]] 4
    %89 = dma.general %s5, 11776, %s68, %s55, [#allocation7], [#allocation8], %s66, 0
    %v90 = vld [vmem:[%s3] sm:$0xff]
    %v91 = vld [vmem:[%s3 + $0x8] sm:$0xff]
    %v92 = vld [vmem:[%s3 + $0x10] sm:$0xff]
    %v93 = vld [vmem:[%s3 + $0x18] sm:$0xff]
    %v94 = vld [vmem:[%s0] sm:$0xff]
    %v95 = vld [vmem:[%s0 + $0x8] sm:$0xff]
    %v96 = vld [vmem:[%s1] sm:$0xff]
    %v97 = vld [vmem:[%s1 + $0x8] sm:$0xff]
    %v98 = vld [vmem:[%s1 + $0x10] sm:$0xff]
    %v99 = vld [vmem:[%s1 + $0x18] sm:$0xff]
    %v100 = vld [vmem:[%s1 + $0x20] sm:$0xff]
    %v101 = vld [vmem:[%s1 + $0x28] sm:$0xff]
    %v102 = vld [vmem:[%s1 + $0x30] sm:$0xff]
    %v103 = vld [vmem:[%s1 + $0x38] sm:$0xff]
    %v104 = vld [vmem:[%s1 + $0x40] sm:$0xff]
    %v105 = vld [vmem:[%s1 + $0x48] sm:$0xff]
    %v106 = vld [vmem:[%s1 + $0x50] sm:$0xff]
    %v107 = vld [vmem:[%s1 + $0x58] sm:$0xff]
    %v108 = vld [vmem:[%s1 + $0x60] sm:$0xff]
    %v109 = vld [vmem:[%s1 + $0x68] sm:$0xff]
    %v110 = vld [vmem:[%s1 + $0x70] sm:$0xff]
    %v111 = vld [vmem:[%s1 + $0x78] sm:$0xff]
    %v112 = vld [vmem:[%s2] sm:$0xff]
    %v113 = vld [vmem:[%s2 + $0x8] sm:$0xff]
    %v114 = vld [vmem:[%s2 + $0x10] sm:$0xff]
    %v115 = vld [vmem:[%s2 + $0x18] sm:$0xff]
    %v116 = vld [vmem:[%s2 + $0x20] sm:$0xff]
    %v117 = vld [vmem:[%s2 + $0x28] sm:$0xff]
    %v118 = vld [vmem:[%s2 + $0x30] sm:$0xff]
    %v119 = vld [vmem:[%s2 + $0x38] sm:$0xff]
    %v120 = vpack.c.bf16 %v94, %v94
    %v121 = vlaneseq
    %v122 = vshrl.u32 %v121, 7
    %v123 = vsub.s32 5, %v122
    %v124 = vrot.slane %v90, %v123
    %v141 = vunpack.c.l.b16 %v96
    %v142 = vunpack.c.l.b16 %v97
    %v143 = vunpack.c.l.b16 %v98
    %v144 = vunpack.c.l.b16 %v99
    %v145 = vunpack.c.l.b16 %v100
    %v146 = vunpack.c.l.b16 %v101
    %v147 = vunpack.c.l.b16 %v102
    %v148 = vunpack.c.l.b16 %v103
    %v149 = vunpack.c.l.b16 %v104
    %v150 = vunpack.c.l.b16 %v105
    %v151 = vunpack.c.l.b16 %v106
    %v152 = vunpack.c.l.b16 %v107
    %v153 = vunpack.c.l.b16 %v108
    %v154 = vunpack.c.l.b16 %v109
    %v155 = vunpack.c.l.b16 %v110
    %v156 = vunpack.c.l.b16 %v111
    %v157 = vpack.c.b16 %v142, %v141
    %v158 = vpack.c.b16 %v144, %v143
    %v159 = vpack.c.b16 %v146, %v145
    %v160 = vpack.c.b16 %v148, %v147
    %v161 = vpack.c.b16 %v150, %v149
    %v162 = vpack.c.b16 %v152, %v151
    %v163 = vpack.c.b16 %v154, %v153
    %v164 = vpack.c.b16 %v156, %v155
    %173 = vmatprep.subr.bf16.mxu0 0
    %174 = vmatpush1.bf16.msra.mxu0 %v157
    %175 = vmatprep.subr.bf16.mxu0 0
    %176 = vmatpush1.bf16.msra.mxu0 %v158
    %177 = vmatprep.subr.bf16.mxu0 0
    %178 = vmatpush1.bf16.msra.mxu0 %v159
    %179 = vmatprep.subr.bf16.mxu0 0
    %180 = vmatpush1.bf16.msra.mxu0 %v160
    %181 = vmatprep.subr.bf16.mxu0 0
    %182 = vmatpush1.bf16.msra.mxu0 %v161
    %183 = vmatprep.subr.bf16.mxu0 0
    %184 = vmatpush1.bf16.msra.mxu0 %v162
    %185 = vmatprep.subr.bf16.mxu0 0
    %186 = vmatpush1.bf16.msra.mxu0 %v163
    %187 = vmatprep.subr.bf16.mxu0 0
    %188 = vmatpush1.bf16.msra.mxu0 %v164
    %189 = vmatprep.subr.bf16.mxu0 0
    %190 = vmatpush1.bf16.msra.mxu0 0
    %191 = vmatprep.subr.bf16.mxu0 0
    %192 = vmatpush1.bf16.msra.mxu0 0
    %193 = vmatprep.subr.bf16.mxu0 0
    %194 = vmatpush1.bf16.msra.mxu0 0
    %195 = vmatprep.subr.bf16.mxu0 0
    %196 = vmatpush1.bf16.msra.mxu0 0
    %197 = vmatprep.subr.bf16.mxu0 0
    %198 = vmatpush1.bf16.msra.mxu0 0
    %199 = vmatprep.subr.bf16.mxu0 0
    %200 = vmatpush1.bf16.msra.mxu0 0
    %201 = vmatprep.subr.bf16.mxu0 0
    %202 = vmatpush1.bf16.msra.mxu0 0
    %203 = vmatprep.subr.bf16.mxu0 0
    %204 = vmatpush1.bf16.msra.mxu0 0
    %205 = vmatprep.mubr.bf16.mxu0 0
    %206 = vmatmul.mubr.bf16.gmra.mrb[0].mxu0 %v120
    %v207 = vpop.f32.mrb[0].mxu0
    %v208 = vadd.f32 %v124, %v207
    %v209 = vpop.f32.mrb[0].mxu0
    %v210 = vpop.f32.mrb[0].mxu0
    %v211 = vpop.f32.mrb[0].mxu0
    %212 = vdwg.mxu0
    %v213 = vmax.f32 %v208, 0.0
    %v214 = vpack.c.bf16 %v213, %v213
    %v215 = vlaneseq
    %v216 = vshrl.u32 %v215, 7
    %v217 = vsub.s32 6, %v216
    %v218 = vrot.slane %v90, %v217
    %v219 = vunpack.c.h.b16 %v96
    %v220 = vunpack.c.h.b16 %v97
    %v221 = vunpack.c.h.b16 %v98
    %v222 = vunpack.c.h.b16 %v99
    %v223 = vunpack.c.h.b16 %v100
    %v224 = vunpack.c.h.b16 %v101
    %v225 = vunpack.c.h.b16 %v102
    %v226 = vunpack.c.h.b16 %v103
    %v227 = vunpack.c.h.b16 %v104
    %v228 = vunpack.c.h.b16 %v105
    %v229 = vunpack.c.h.b16 %v106
    %v230 = vunpack.c.h.b16 %v107
    %v231 = vunpack.c.h.b16 %v108
    %v232 = vunpack.c.h.b16 %v109
    %v233 = vunpack.c.h.b16 %v110
    %v234 = vunpack.c.h.b16 %v111
    %v235 = vpack.c.b16 %v220, %v219
    %v236 = vpack.c.b16 %v222, %v221
    %v237 = vpack.c.b16 %v224, %v223
    %v238 = vpack.c.b16 %v226, %v225
    %v239 = vpack.c.b16 %v228, %v227
    %v240 = vpack.c.b16 %v230, %v229
    %v241 = vpack.c.b16 %v232, %v231
    %v242 = vpack.c.b16 %v234, %v233
    %251 = vmatprep.subr.bf16.mxu0 0
    %252 = vmatpush1.bf16.msra.mxu0 %v235
    %253 = vmatprep.subr.bf16.mxu0 0
    %254 = vmatpush1.bf16.msra.mxu0 %v236
    %255 = vmatprep.subr.bf16.mxu0 0
    %256 = vmatpush1.bf16.msra.mxu0 %v237
    %257 = vmatprep.subr.bf16.mxu0 0
    %258 = vmatpush1.bf16.msra.mxu0 %v238
    %259 = vmatprep.subr.bf16.mxu0 0
    %260 = vmatpush1.bf16.msra.mxu0 %v239
    %261 = vmatprep.subr.bf16.mxu0 0
    %262 = vmatpush1.bf16.msra.mxu0 %v240
    %263 = vmatprep.subr.bf16.mxu0 0
    %264 = vmatpush1.bf16.msra.mxu0 %v241
    %265 = vmatprep.subr.bf16.mxu0 0
    %266 = vmatpush1.bf16.msra.mxu0 %v242
    %267 = vmatprep.subr.bf16.mxu0 0
    %268 = vmatpush1.bf16.msra.mxu0 0
    %269 = vmatprep.subr.bf16.mxu0 0
    %270 = vmatpush1.bf16.msra.mxu0 0
    %271 = vmatprep.subr.bf16.mxu0 0
    %272 = vmatpush1.bf16.msra.mxu0 0
    %273 = vmatprep.subr.bf16.mxu0 0
    %274 = vmatpush1.bf16.msra.mxu0 0
    %275 = vmatprep.subr.bf16.mxu0 0
    %276 = vmatpush1.bf16.msra.mxu0 0
    %277 = vmatprep.subr.bf16.mxu0 0
    %278 = vmatpush1.bf16.msra.mxu0 0
    %279 = vmatprep.subr.bf16.mxu0 0
    %280 = vmatpush1.bf16.msra.mxu0 0
    %281 = vmatprep.subr.bf16.mxu0 0
    %282 = vmatpush1.bf16.msra.mxu0 0
    %283 = vmatprep.mubr.bf16.mxu0 0
    %284 = vmatmul.mubr.bf16.gmra.mrb[0].mxu0 %v214
    %v285 = vpop.f32.mrb[0].mxu0
    %v286 = vadd.f32 %v218, %v285
    %v287 = vpop.f32.mrb[0].mxu0
    %v288 = vpop.f32.mrb[0].mxu0
    %v289 = vpop.f32.mrb[0].mxu0
    %290 = vdwg.mxu0
    %v291 = vmax.f32 %v286, 0.0
    %v292 = vpack.c.bf16 %v95, %v95
    %v293 = vlaneseq
    %v294 = vshrl.u32 %v293, 7
    %v295 = vsub.s32 0, %v294
    %v296 = vrot.slane %v90, %v295
    %v297 = vlaneseq
    %v298 = vshrl.u32 %v297, 7
    %v299 = vsub.s32 0, %v298
    %v300 = vrot.slane %v91, %v299
    %v301 = vlaneseq
    %v302 = vshrl.u32 %v301, 7
    %v303 = vsub.s32 0, %v302
    %v304 = vrot.slane %v92, %v303
    %v305 = vlaneseq
    %v306 = vshrl.u32 %v305, 7
    %v307 = vsub.s32 0, %v306
    %v308 = vrot.slane %v93, %v307
    %v317 = vunpack.c.l.b16 %v112
    %v318 = vunpack.c.h.b16 %v112
    %v319 = vunpack.c.l.b16 %v113
    %v320 = vunpack.c.h.b16 %v113
    %v321 = vunpack.c.l.b16 %v114
    %v322 = vunpack.c.h.b16 %v114
    %v323 = vunpack.c.l.b16 %v115
    %v324 = vunpack.c.h.b16 %v115
    %v325 = vunpack.c.l.b16 %v116
    %v326 = vunpack.c.h.b16 %v116
    %v327 = vunpack.c.l.b16 %v117
    %v328 = vunpack.c.h.b16 %v117
    %v329 = vunpack.c.l.b16 %v118
    %v330 = vunpack.c.h.b16 %v118
    %v331 = vunpack.c.l.b16 %v119
    %v332 = vunpack.c.h.b16 %v119
    %v333 = vpack.c.b16 %v321, %v317
    %v334 = vpack.c.b16 %v322, %v318
    %v335 = vpack.c.b16 %v323, %v319
    %v336 = vpack.c.b16 %v324, %v320
    %v337 = vpack.c.b16 %v329, %v325
    %v338 = vpack.c.b16 %v330, %v326
    %v339 = vpack.c.b16 %v331, %v327
    %v340 = vpack.c.b16 %v332, %v328
    %vm349 = vcmask 261120
    %v351 = vsel %vm349, %v292, 0
    %353 = vmatprep.subr.bf16.mxu0 %v334
    %354 = vmatpush1.bf16.msra.mxu0 %v333
    %355 = vmatprep.subr.bf16.mxu0 %v338
    %356 = vmatpush1.bf16.msra.mxu0 %v337
    %357 = vmatprep.subr.bf16.mxu0 0
    %358 = vmatpush1.bf16.msra.mxu0 0
    %359 = vmatprep.subr.bf16.mxu0 0
    %360 = vmatpush1.bf16.msra.mxu0 0
    %361 = vmatprep.subr.bf16.mxu0 0
    %362 = vmatpush1.bf16.msra.mxu0 0
    %363 = vmatprep.subr.bf16.mxu0 0
    %364 = vmatpush1.bf16.msra.mxu0 0
    %365 = vmatprep.subr.bf16.mxu0 0
    %366 = vmatpush1.bf16.msra.mxu0 0
    %367 = vmatprep.subr.bf16.mxu0 0
    %368 = vmatpush1.bf16.msra.mxu0 0
    %369 = vmatprep.subr.bf16.mxu0 0
    %370 = vmatpush1.bf16.msra.mxu0 0
    %371 = vmatprep.subr.bf16.mxu0 0
    %372 = vmatpush1.bf16.msra.mxu0 0
    %373 = vmatprep.subr.bf16.mxu0 0
    %374 = vmatpush1.bf16.msra.mxu0 0
    %375 = vmatprep.subr.bf16.mxu0 0
    %376 = vmatpush1.bf16.msra.mxu0 0
    %377 = vmatprep.subr.bf16.mxu0 0
    %378 = vmatpush1.bf16.msra.mxu0 0
    %379 = vmatprep.subr.bf16.mxu0 0
    %380 = vmatpush1.bf16.msra.mxu0 0
    %381 = vmatprep.subr.bf16.mxu0 0
    %382 = vmatpush1.bf16.msra.mxu0 0
    %383 = vmatprep.subr.bf16.mxu0 0
    %384 = vmatpush1.bf16.msra.mxu0 0
    %385 = vmatprep.mubr.bf16.mxu0 0
    %386 = vmatmul.mubr.bf16.gmra.mrb[0].mxu0 %v351
    %v387 = vpop.f32.mrb[0].mxu0
    %v388 = vadd.f32 %v296, %v387
    %v389 = vpop.f32.mrb[0].mxu0
    %v390 = vadd.f32 %v300, %v389
    %v391 = vpop.f32.mrb[0].mxu0
    %v392 = vpop.f32.mrb[0].mxu0
    %393 = vdwg.mxu0
    %394 = vmatprep.subr.bf16.mxu0 %v336
    %395 = vmatpush1.bf16.msra.mxu0 %v335
    %396 = vmatprep.subr.bf16.mxu0 %v340
    %397 = vmatpush1.bf16.msra.mxu0 %v339
    %398 = vmatprep.subr.bf16.mxu0 0
    %399 = vmatpush1.bf16.msra.mxu0 0
    %400 = vmatprep.subr.bf16.mxu0 0
    %401 = vmatpush1.bf16.msra.mxu0 0
    %402 = vmatprep.subr.bf16.mxu0 0
    %403 = vmatpush1.bf16.msra.mxu0 0
    %404 = vmatprep.subr.bf16.mxu0 0
    %405 = vmatpush1.bf16.msra.mxu0 0
    %406 = vmatprep.subr.bf16.mxu0 0
    %407 = vmatpush1.bf16.msra.mxu0 0
    %408 = vmatprep.subr.bf16.mxu0 0
    %409 = vmatpush1.bf16.msra.mxu0 0
    %410 = vmatprep.subr.bf16.mxu0 0
    %411 = vmatpush1.bf16.msra.mxu0 0
    %412 = vmatprep.subr.bf16.mxu0 0
    %413 = vmatpush1.bf16.msra.mxu0 0
    %414 = vmatprep.subr.bf16.mxu0 0
    %415 = vmatpush1.bf16.msra.mxu0 0
    %416 = vmatprep.subr.bf16.mxu0 0
    %417 = vmatpush1.bf16.msra.mxu0 0
    %418 = vmatprep.subr.bf16.mxu0 0
    %419 = vmatpush1.bf16.msra.mxu0 0
    %420 = vmatprep.subr.bf16.mxu0 0
    %421 = vmatpush1.bf16.msra.mxu0 0
    %422 = vmatprep.subr.bf16.mxu0 0
    %423 = vmatpush1.bf16.msra.mxu0 0
    %424 = vmatprep.subr.bf16.mxu0 0
    %425 = vmatpush1.bf16.msra.mxu0 0
    %426 = vmatprep.mubr.bf16.mxu0 0
    %427 = vmatmul.mubr.bf16.gmra.mrb[0].mxu0 %v351
    %v428 = vpop.f32.mrb[0].mxu0
    %v429 = vadd.f32 %v304, %v428
    %v430 = vpop.f32.mrb[0].mxu0
    %v431 = vadd.f32 %v308, %v430
    %v432 = vpop.f32.mrb[0].mxu0
    %v433 = vpop.f32.mrb[0].mxu0
    %434 = vdwg.mxu0
    %v435 = vmax.f32 %v388, 0.0
    %v436 = vmax.f32 %v390, 0.0
    %v437 = vmax.f32 %v429, 0.0
    %v438 = vmax.f32 %v431, 0.0
    %s439 = smul.u32 4, 64
    %s440 = smul.u32 %s439, 8
    %s441 = sshll.u32 %s440, 4
    %442 = dma.done [#allocation4], %s441
    %v443 = vld [vmem:[#allocation2] sm:$0xff]
    %v444 = vld [vmem:[#allocation2 + $0x8] sm:$0xff]
    %v445 = vld [vmem:[#allocation2 + $0x10] sm:$0xff]
    %v446 = vld [vmem:[#allocation2 + $0x18] sm:$0xff]
    %v447 = vld [vmem:[#allocation2 + $0x40] sm:$0xff]
    %v448 = vld [vmem:[#allocation2 + $0x48] sm:$0xff]
    %v449 = vld [vmem:[#allocation2 + $0x50] sm:$0xff]
    %v450 = vld [vmem:[#allocation2 + $0x58] sm:$0xff]
    %v451 = vld [vmem:[#allocation2 + $0x80] sm:$0xff]
    %v452 = vld [vmem:[#allocation2 + $0x88] sm:$0xff]
    %v453 = vld [vmem:[#allocation2 + $0x90] sm:$0xff]
    %v454 = vld [vmem:[#allocation2 + $0x98] sm:$0xff]
    %v455 = vld [vmem:[#allocation2 + $0xc0] sm:$0xff]
    %v456 = vld [vmem:[#allocation2 + $0xc8] sm:$0xff]
    %v457 = vld [vmem:[#allocation2 + $0xd0] sm:$0xff]
    %v458 = vld [vmem:[#allocation2 + $0xd8] sm:$0xff]
    %v459 = vld [vmem:[#allocation2 + $0x100] sm:$0xff]
    %v460 = vld [vmem:[#allocation2 + $0x108] sm:$0xff]
    %v461 = vld [vmem:[#allocation2 + $0x110] sm:$0xff]
    %v462 = vld [vmem:[#allocation2 + $0x118] sm:$0xff]
    %v463 = vld [vmem:[#allocation2 + $0x140] sm:$0xff]
    %v464 = vld [vmem:[#allocation2 + $0x148] sm:$0xff]
    %v465 = vld [vmem:[#allocation2 + $0x150] sm:$0xff]
    %v466 = vld [vmem:[#allocation2 + $0x158] sm:$0xff]
    %v467 = vld [vmem:[#allocation2 + $0x180] sm:$0xff]
    %v468 = vld [vmem:[#allocation2 + $0x188] sm:$0xff]
    %v469 = vld [vmem:[#allocation2 + $0x190] sm:$0xff]
    %v470 = vld [vmem:[#allocation2 + $0x198] sm:$0xff]
    %v471 = vld [vmem:[#allocation2 + $0x1c0] sm:$0xff]
    %v472 = vld [vmem:[#allocation2 + $0x1c8] sm:$0xff]
    %v473 = vld [vmem:[#allocation2 + $0x1d0] sm:$0xff]
    %v474 = vld [vmem:[#allocation2 + $0x1d8] sm:$0xff]
    %v475 = vld [vmem:[#allocation2 + $0x200] sm:$0xff]
    %v476 = vld [vmem:[#allocation2 + $0x208] sm:$0xff]
    %v477 = vld [vmem:[#allocation2 + $0x210] sm:$0xff]
    %v478 = vld [vmem:[#allocation2 + $0x218] sm:$0xff]
    %v479 = vld [vmem:[#allocation2 + $0x240] sm:$0xff]
    %v480 = vld [vmem:[#allocation2 + $0x248] sm:$0xff]
    %v481 = vld [vmem:[#allocation2 + $0x250] sm:$0xff]
    %v482 = vld [vmem:[#allocation2 + $0x258] sm:$0xff]
    %v483 = vld [vmem:[#allocation2 + $0x280] sm:$0xff]
    %v484 = vld [vmem:[#allocation2 + $0x288] sm:$0xff]
    %v485 = vld [vmem:[#allocation2 + $0x290] sm:$0xff]
    %v486 = vld [vmem:[#allocation2 + $0x298] sm:$0xff]
    %v487 = vld [vmem:[#allocation2 + $0x2c0] sm:$0xff]
    %v488 = vld [vmem:[#allocation2 + $0x2c8] sm:$0xff]
    %v489 = vld [vmem:[#allocation2 + $0x2d0] sm:$0xff]
    %v490 = vld [vmem:[#allocation2 + $0x2d8] sm:$0xff]
    %v491 = vld [vmem:[#allocation2 + $0x300] sm:$0xff]
    %v492 = vld [vmem:[#allocation2 + $0x308] sm:$0xff]
    %v493 = vld [vmem:[#allocation2 + $0x310] sm:$0xff]
    %v494 = vld [vmem:[#allocation2 + $0x318] sm:$0xff]
    %v495 = vld [vmem:[#allocation2 + $0x340] sm:$0xff]
    %v496 = vld [vmem:[#allocation2 + $0x348] sm:$0xff]
    %v497 = vld [vmem:[#allocation2 + $0x350] sm:$0xff]
    %v498 = vld [vmem:[#allocation2 + $0x358] sm:$0xff]
    %v499 = vld [vmem:[#allocation2 + $0x380] sm:$0xff]
    %v500 = vld [vmem:[#allocation2 + $0x388] sm:$0xff]
    %v501 = vld [vmem:[#allocation2 + $0x390] sm:$0xff]
    %v502 = vld [vmem:[#allocation2 + $0x398] sm:$0xff]
    %v503 = vld [vmem:[#allocation2 + $0x3c0] sm:$0xff]
    %v504 = vld [vmem:[#allocation2 + $0x3c8] sm:$0xff]
    %v505 = vld [vmem:[#allocation2 + $0x3d0] sm:$0xff]
    %v506 = vld [vmem:[#allocation2 + $0x3d8] sm:$0xff]
    %v507 = vld [vmem:[#allocation2 + $0x400] sm:$0xff]
    %v508 = vld [vmem:[#allocation2 + $0x408] sm:$0xff]
    %v509 = vld [vmem:[#allocation2 + $0x410] sm:$0xff]
    %v510 = vld [vmem:[#allocation2 + $0x418] sm:$0xff]
    %v511 = vld [vmem:[#allocation2 + $0x440] sm:$0xff]
    %v512 = vld [vmem:[#allocation2 + $0x448] sm:$0xff]
    %v513 = vld [vmem:[#allocation2 + $0x450] sm:$0xff]
    %v514 = vld [vmem:[#allocation2 + $0x458] sm:$0xff]
    %v515 = vld [vmem:[#allocation2 + $0x480] sm:$0xff]
    %v516 = vld [vmem:[#allocation2 + $0x488] sm:$0xff]
    %v517 = vld [vmem:[#allocation2 + $0x490] sm:$0xff]
    %v518 = vld [vmem:[#allocation2 + $0x498] sm:$0xff]
    %v519 = vld [vmem:[#allocation2 + $0x4c0] sm:$0xff]
    %v520 = vld [vmem:[#allocation2 + $0x4c8] sm:$0xff]
    %v521 = vld [vmem:[#allocation2 + $0x4d0] sm:$0xff]
    %v522 = vld [vmem:[#allocation2 + $0x4d8] sm:$0xff]
    %v523 = vld [vmem:[#allocation2 + $0x500] sm:$0xff]
    %v524 = vld [vmem:[#allocation2 + $0x508] sm:$0xff]
    %v525 = vld [vmem:[#allocation2 + $0x510] sm:$0xff]
    %v526 = vld [vmem:[#allocation2 + $0x518] sm:$0xff]
    %v527 = vld [vmem:[#allocation2 + $0x540] sm:$0xff]
    %v528 = vld [vmem:[#allocation2 + $0x548] sm:$0xff]
    %v529 = vld [vmem:[#allocation2 + $0x550] sm:$0xff]
    %v530 = vld [vmem:[#allocation2 + $0x558] sm:$0xff]
    %v531 = vld [vmem:[#allocation2 + $0x580] sm:$0xff]
    %v532 = vld [vmem:[#allocation2 + $0x588] sm:$0xff]
    %v533 = vld [vmem:[#allocation2 + $0x590] sm:$0xff]
    %v534 = vld [vmem:[#allocation2 + $0x598] sm:$0xff]
    %v535 = vld [vmem:[#allocation2 + $0x5c0] sm:$0xff]
    %v536 = vld [vmem:[#allocation2 + $0x5c8] sm:$0xff]
    %v537 = vld [vmem:[#allocation2 + $0x5d0] sm:$0xff]
    %v538 = vld [vmem:[#allocation2 + $0x5d8] sm:$0xff]
    %v539 = vld [vmem:[#allocation2 + $0x600] sm:$0xff]
    %v540 = vld [vmem:[#allocation2 + $0x608] sm:$0xff]
    %v541 = vld [vmem:[#allocation2 + $0x610] sm:$0xff]
    %v542 = vld [vmem:[#allocation2 + $0x618] sm:$0xff]
    %v543 = vld [vmem:[#allocation2 + $0x640] sm:$0xff]
    %v544 = vld [vmem:[#allocation2 + $0x648] sm:$0xff]
    %v545 = vld [vmem:[#allocation2 + $0x650] sm:$0xff]
    %v546 = vld [vmem:[#allocation2 + $0x658] sm:$0xff]
    %v547 = vld [vmem:[#allocation2 + $0x680] sm:$0xff]
    %v548 = vld [vmem:[#allocation2 + $0x688] sm:$0xff]
    %v549 = vld [vmem:[#allocation2 + $0x690] sm:$0xff]
    %v550 = vld [vmem:[#allocation2 + $0x698] sm:$0xff]
    %v551 = vld [vmem:[#allocation2 + $0x6c0] sm:$0xff]
    %v552 = vld [vmem:[#allocation2 + $0x6c8] sm:$0xff]
    %v553 = vld [vmem:[#allocation2 + $0x6d0] sm:$0xff]
    %v554 = vld [vmem:[#allocation2 + $0x6d8] sm:$0xff]
    %v555 = vld [vmem:[#allocation2 + $0x700] sm:$0xff]
    %v556 = vld [vmem:[#allocation2 + $0x708] sm:$0xff]
    %v557 = vld [vmem:[#allocation2 + $0x710] sm:$0xff]
    %v558 = vld [vmem:[#allocation2 + $0x718] sm:$0xff]
    %v559 = vld [vmem:[#allocation2 + $0x740] sm:$0xff]
    %v560 = vld [vmem:[#allocation2 + $0x748] sm:$0xff]
    %v561 = vld [vmem:[#allocation2 + $0x750] sm:$0xff]
    %v562 = vld [vmem:[#allocation2 + $0x758] sm:$0xff]
    %v563 = vld [vmem:[#allocation2 + $0x780] sm:$0xff]
    %v564 = vld [vmem:[#allocation2 + $0x788] sm:$0xff]
    %v565 = vld [vmem:[#allocation2 + $0x790] sm:$0xff]
    %v566 = vld [vmem:[#allocation2 + $0x798] sm:$0xff]
    %v567 = vld [vmem:[#allocation2 + $0x7c0] sm:$0xff]
    %v568 = vld [vmem:[#allocation2 + $0x7c8] sm:$0xff]
    %v569 = vld [vmem:[#allocation2 + $0x7d0] sm:$0xff]
    %v570 = vld [vmem:[#allocation2 + $0x7d8] sm:$0xff]
    %v571 = vld [vmem:[#allocation2 + $0x20] sm:$0xff]
    %v572 = vld [vmem:[#allocation2 + $0x28] sm:$0xff]
    %v573 = vld [vmem:[#allocation2 + $0x60] sm:$0xff]
    %v574 = vld [vmem:[#allocation2 + $0x68] sm:$0xff]
    %v575 = vld [vmem:[#allocation2 + $0xa0] sm:$0xff]
    %v576 = vld [vmem:[#allocation2 + $0xa8] sm:$0xff]
    %v577 = vld [vmem:[#allocation2 + $0xe0] sm:$0xff]
    %v578 = vld [vmem:[#allocation2 + $0xe8] sm:$0xff]
    %v579 = vld [vmem:[#allocation2 + $0x120] sm:$0xff]
    %v580 = vld [vmem:[#allocation2 + $0x128] sm:$0xff]
    %v581 = vld [vmem:[#allocation2 + $0x160] sm:$0xff]
    %v582 = vld [vmem:[#allocation2 + $0x168] sm:$0xff]
    %v583 = vld [vmem:[#allocation2 + $0x1a0] sm:$0xff]
    %v584 = vld [vmem:[#allocation2 + $0x1a8] sm:$0xff]
    %v585 = vld [vmem:[#allocation2 + $0x1e0] sm:$0xff]
    %v586 = vld [vmem:[#allocation2 + $0x1e8] sm:$0xff]
    %v587 = vld [vmem:[#allocation2 + $0x220] sm:$0xff]
    %v588 = vld [vmem:[#allocation2 + $0x228] sm:$0xff]
    %v589 = vld [vmem:[#allocation2 + $0x260] sm:$0xff]
    %v590 = vld [vmem:[#allocation2 + $0x268] sm:$0xff]
    %v591 = vld [vmem:[#allocation2 + $0x2a0] sm:$0xff]
    %v592 = vld [vmem:[#allocation2 + $0x2a8] sm:$0xff]
    %v593 = vld [vmem:[#allocation2 + $0x2e0] sm:$0xff]
    %v594 = vld [vmem:[#allocation2 + $0x2e8] sm:$0xff]
    %v595 = vld [vmem:[#allocation2 + $0x320] sm:$0xff]
    %v596 = vld [vmem:[#allocation2 + $0x328] sm:$0xff]
    %v597 = vld [vmem:[#allocation2 + $0x360] sm:$0xff]
    %v598 = vld [vmem:[#allocation2 + $0x368] sm:$0xff]
    %v599 = vld [vmem:[#allocation2 + $0x3a0] sm:$0xff]
    %v600 = vld [vmem:[#allocation2 + $0x3a8] sm:$0xff]
    %v601 = vld [vmem:[#allocation2 + $0x3e0] sm:$0xff]
    %v602 = vld [vmem:[#allocation2 + $0x3e8] sm:$0xff]
    %v603 = vld [vmem:[#allocation2 + $0x420] sm:$0xff]
    %v604 = vld [vmem:[#allocation2 + $0x428] sm:$0xff]
    %v605 = vld [vmem:[#allocation2 + $0x460] sm:$0xff]
    %v606 = vld [vmem:[#allocation2 + $0x468] sm:$0xff]
    %v607 = vld [vmem:[#allocation2 + $0x4a0] sm:$0xff]
    %v608 = vld [vmem:[#allocation2 + $0x4a8] sm:$0xff]
    %v609 = vld [vmem:[#allocation2 + $0x4e0] sm:$0xff]
    %v610 = vld [vmem:[#allocation2 + $0x4e8] sm:$0xff]
    %v611 = vld [vmem:[#allocation2 + $0x520] sm:$0xff]
    %v612 = vld [vmem:[#allocation2 + $0x528] sm:$0xff]
    %v613 = vld [vmem:[#allocation2 + $0x560] sm:$0xff]
    %v614 = vld [vmem:[#allocation2 + $0x568] sm:$0xff]
    %v615 = vld [vmem:[#allocation2 + $0x5a0] sm:$0xff]
    %v616 = vld [vmem:[#allocation2 + $0x5a8] sm:$0xff]
    %v617 = vld [vmem:[#allocation2 + $0x5e0] sm:$0xff]
    %v618 = vld [vmem:[#allocation2 + $0x5e8] sm:$0xff]
    %v619 = vld [vmem:[#allocation2 + $0x620] sm:$0xff]
    %v620 = vld [vmem:[#allocation2 + $0x628] sm:$0xff]
    %v621 = vld [vmem:[#allocation2 + $0x660] sm:$0xff]
    %v622 = vld [vmem:[#allocation2 + $0x668] sm:$0xff]
    %v623 = vld [vmem:[#allocation2 + $0x6a0] sm:$0xff]
    %v624 = vld [vmem:[#allocation2 + $0x6a8] sm:$0xff]
    %v625 = vld [vmem:[#allocation2 + $0x6e0] sm:$0xff]
    %v626 = vld [vmem:[#allocation2 + $0x6e8] sm:$0xff]
    %v627 = vld [vmem:[#allocation2 + $0x720] sm:$0xff]
    %v628 = vld [vmem:[#allocation2 + $0x728] sm:$0xff]
    %v629 = vld [vmem:[#allocation2 + $0x760] sm:$0xff]
    %v630 = vld [vmem:[#allocation2 + $0x768] sm:$0xff]
    %v631 = vld [vmem:[#allocation2 + $0x7a0] sm:$0xff]
    %v632 = vld [vmem:[#allocation2 + $0x7a8] sm:$0xff]
    %v633 = vld [vmem:[#allocation2 + $0x7e0] sm:$0xff]
    %v634 = vld [vmem:[#allocation2 + $0x7e8] sm:$0xff]
    %v635 = vpack.c.bf16 %v435, %v435
    %v636 = vpack.c.bf16 %v436, %v436
    %v637 = vpack.c.bf16 %v437, %v437
    %v638 = vpack.c.bf16 %v438, %v438
    %v639 = vlaneseq
    %v640 = vshrl.u32 %v639, 7
    %v641 = vsub.s32 1, %v640
    %v642 = vrot.slane %v90, %v641
    %v643 = vlaneseq
    %v644 = vshrl.u32 %v643, 7
    %v645 = vsub.s32 1, %v644
    %v646 = vrot.slane %v91, %v645
    %v647 = vlaneseq
    %v648 = vshrl.u32 %v647, 7
    %v649 = vsub.s32 1, %v648
    %v650 = vrot.slane %v92, %v649
    %v651 = vlaneseq
    %v652 = vshrl.u32 %v651, 7
    %v653 = vsub.s32 1, %v652
    %v654 = vrot.slane %v93, %v653
    %655 = vmatprep.subr.bf16.mxu0 %v444
    %656 = vmatpush1.bf16.msra.mxu0 %v443
    %657 = vmatprep.subr.bf16.mxu0 %v448
    %658 = vmatpush1.bf16.msra.mxu0 %v447
    %659 = vmatprep.subr.bf16.mxu0 %v452
    %660 = vmatpush1.bf16.msra.mxu0 %v451
    %661 = vmatprep.subr.bf16.mxu0 %v456
    %662 = vmatpush1.bf16.msra.mxu0 %v455
    %663 = vmatprep.subr.bf16.mxu0 %v460
    %664 = vmatpush1.bf16.msra.mxu0 %v459
    %665 = vmatprep.subr.bf16.mxu0 %v464
    %666 = vmatpush1.bf16.msra.mxu0 %v463
    %667 = vmatprep.subr.bf16.mxu0 %v468
    %668 = vmatpush1.bf16.msra.mxu0 %v467
    %669 = vmatprep.subr.bf16.mxu0 %v472
    %670 = vmatpush1.bf16.msra.mxu0 %v471
    %671 = vmatprep.subr.bf16.mxu0 %v476
    %672 = vmatpush1.bf16.msra.mxu0 %v475
    %673 = vmatprep.subr.bf16.mxu0 %v480
    %674 = vmatpush1.bf16.msra.mxu0 %v479
    %675 = vmatprep.subr.bf16.mxu0 %v484
    %676 = vmatpush1.bf16.msra.mxu0 %v483
    %677 = vmatprep.subr.bf16.mxu0 %v488
    %678 = vmatpush1.bf16.msra.mxu0 %v487
    %679 = vmatprep.subr.bf16.mxu0 %v492
    %680 = vmatpush1.bf16.msra.mxu0 %v491
    %681 = vmatprep.subr.bf16.mxu0 %v496
    %682 = vmatpush1.bf16.msra.mxu0 %v495
    %683 = vmatprep.subr.bf16.mxu0 %v500
    %684 = vmatpush1.bf16.msra.mxu0 %v499
    %685 = vmatprep.subr.bf16.mxu0 %v504
    %686 = vmatpush1.bf16.msra.mxu0 %v503
    %687 = vmatprep.mubr.bf16.mxu0 %v636
    %688 = vmatmul.mubr.bf16.gmra.mrb[0].mxu0 %v635
    %v689 = vpop.f32.mrb[0].mxu0
    %v690 = vadd.f32 %v642, %v689
    %v691 = vpop.f32.mrb[0].mxu0
    %v692 = vadd.f32 %v646, %v691
    %v693 = vpop.f32.mrb[0].mxu0
    %v694 = vpop.f32.mrb[0].mxu0
    %695 = vdwg.mxu0
    %696 = vmatprep.subr.bf16.mxu0 %v508
    %697 = vmatpush1.bf16.msra.mxu0 %v507
    %698 = vmatprep.subr.bf16.mxu0 %v512
    %699 = vmatpush1.bf16.msra.mxu0 %v511
    %700 = vmatprep.subr.bf16.mxu0 %v516
    %701 = vmatpush1.bf16.msra.mxu0 %v515
    %702 = vmatprep.subr.bf16.mxu0 %v520
    %703 = vmatpush1.bf16.msra.mxu0 %v519
    %704 = vmatprep.subr.bf16.mxu0 %v524
    %705 = vmatpush1.bf16.msra.mxu0 %v523
    %706 = vmatprep.subr.bf16.mxu0 %v528
    %707 = vmatpush1.bf16.msra.mxu0 %v527
    %708 = vmatprep.subr.bf16.mxu0 %v532
    %709 = vmatpush1.bf16.msra.mxu0 %v531
    %710 = vmatprep.subr.bf16.mxu0 %v536
    %711 = vmatpush1.bf16.msra.mxu0 %v535
    %712 = vmatprep.subr.bf16.mxu0 %v540
    %713 = vmatpush1.bf16.msra.mxu0 %v539
    %714 = vmatprep.subr.bf16.mxu0 %v544
    %715 = vmatpush1.bf16.msra.mxu0 %v543
    %716 = vmatprep.subr.bf16.mxu0 %v548
    %717 = vmatpush1.bf16.msra.mxu0 %v547
    %718 = vmatprep.subr.bf16.mxu0 %v552
    %719 = vmatpush1.bf16.msra.mxu0 %v551
    %720 = vmatprep.subr.bf16.mxu0 %v556
    %721 = vmatpush1.bf16.msra.mxu0 %v555
    %722 = vmatprep.subr.bf16.mxu0 %v560
    %723 = vmatpush1.bf16.msra.mxu0 %v559
    %724 = vmatprep.subr.bf16.mxu0 %v564
    %725 = vmatpush1.bf16.msra.mxu0 %v563
    %726 = vmatprep.subr.bf16.mxu0 %v568
    %727 = vmatpush1.bf16.msra.mxu0 %v567
    %728 = vmatprep.mubr.bf16.mxu0 %v638
    %729 = vmatmul.mubr.bf16.gmra.mrb[0].mxu0 %v637
    %v730 = vpop.f32.mrb[0].mxu0
    %v731 = vadd.f32 %v690, %v730
    %v732 = vpop.f32.mrb[0].mxu0
    %v733 = vadd.f32 %v692, %v732
    %v734 = vpop.f32.mrb[0].mxu0
    %v735 = vpop.f32.mrb[0].mxu0
    %736 = vdwg.mxu0
    %737 = vmatprep.subr.bf16.mxu0 %v446
    %738 = vmatpush1.bf16.msra.mxu0 %v445
    %739 = vmatprep.subr.bf16.mxu0 %v450
    %740 = vmatpush1.bf16.msra.mxu0 %v449
    %741 = vmatprep.subr.bf16.mxu0 %v454
    %742 = vmatpush1.bf16.msra.mxu0 %v453
    %743 = vmatprep.subr.bf16.mxu0 %v458
    %744 = vmatpush1.bf16.msra.mxu0 %v457
    %745 = vmatprep.subr.bf16.mxu0 %v462
    %746 = vmatpush1.bf16.msra.mxu0 %v461
    %747 = vmatprep.subr.bf16.mxu0 %v466
    %748 = vmatpush1.bf16.msra.mxu0 %v465
    %749 = vmatprep.subr.bf16.mxu0 %v470
    %750 = vmatpush1.bf16.msra.mxu0 %v469
    %751 = vmatprep.subr.bf16.mxu0 %v474
    %752 = vmatpush1.bf16.msra.mxu0 %v473
    %753 = vmatprep.subr.bf16.mxu0 %v478
    %754 = vmatpush1.bf16.msra.mxu0 %v477
    %755 = vmatprep.subr.bf16.mxu0 %v482
    %756 = vmatpush1.bf16.msra.mxu0 %v481
    %757 = vmatprep.subr.bf16.mxu0 %v486
    %758 = vmatpush1.bf16.msra.mxu0 %v485
    %759 = vmatprep.subr.bf16.mxu0 %v490
    %760 = vmatpush1.bf16.msra.mxu0 %v489
    %761 = vmatprep.subr.bf16.mxu0 %v494
    %762 = vmatpush1.bf16.msra.mxu0 %v493
    %763 = vmatprep.subr.bf16.mxu0 %v498
    %764 = vmatpush1.bf16.msra.mxu0 %v497
    %765 = vmatprep.subr.bf16.mxu0 %v502
    %766 = vmatpush1.bf16.msra.mxu0 %v501
    %767 = vmatprep.subr.bf16.mxu0 %v506
    %768 = vmatpush1.bf16.msra.mxu0 %v505
    %769 = vmatprep.mubr.bf16.mxu0 %v636
    %770 = vmatmul.mubr.bf16.gmra.mrb[0].mxu0 %v635
    %v771 = vpop.f32.mrb[0].mxu0
    %v772 = vadd.f32 %v650, %v771
    %v773 = vpop.f32.mrb[0].mxu0
    %v774 = vadd.f32 %v654, %v773
    %v775 = vpop.f32.mrb[0].mxu0
    %v776 = vpop.f32.mrb[0].mxu0
    %777 = vdwg.mxu0
    %778 = vmatprep.subr.bf16.mxu0 %v510
    %779 = vmatpush1.bf16.msra.mxu0 %v509
    %780 = vmatprep.subr.bf16.mxu0 %v514
    %781 = vmatpush1.bf16.msra.mxu0 %v513
    %782 = vmatprep.subr.bf16.mxu0 %v518
    %783 = vmatpush1.bf16.msra.mxu0 %v517
    %784 = vmatprep.subr.bf16.mxu0 %v522
    %785 = vmatpush1.bf16.msra.mxu0 %v521
    %786 = vmatprep.subr.bf16.mxu0 %v526
    %787 = vmatpush1.bf16.msra.mxu0 %v525
    %788 = vmatprep.subr.bf16.mxu0 %v530
    %789 = vmatpush1.bf16.msra.mxu0 %v529
    %790 = vmatprep.subr.bf16.mxu0 %v534
    %791 = vmatpush1.bf16.msra.mxu0 %v533
    %792 = vmatprep.subr.bf16.mxu0 %v538
    %793 = vmatpush1.bf16.msra.mxu0 %v537
    %794 = vmatprep.subr.bf16.mxu0 %v542
    %795 = vmatpush1.bf16.msra.mxu0 %v541
    %796 = vmatprep.subr.bf16.mxu0 %v546
    %797 = vmatpush1.bf16.msra.mxu0 %v545
    %798 = vmatprep.subr.bf16.mxu0 %v550
    %799 = vmatpush1.bf16.msra.mxu0 %v549
    %800 = vmatprep.subr.bf16.mxu0 %v554
    %801 = vmatpush1.bf16.msra.mxu0 %v553
    %802 = vmatprep.subr.bf16.mxu0 %v558
    %803 = vmatpush1.bf16.msra.mxu0 %v557
    %804 = vmatprep.subr.bf16.mxu0 %v562
    %805 = vmatpush1.bf16.msra.mxu0 %v561
    %806 = vmatprep.subr.bf16.mxu0 %v566
    %807 = vmatpush1.bf16.msra.mxu0 %v565
    %808 = vmatprep.subr.bf16.mxu0 %v570
    %809 = vmatpush1.bf16.msra.mxu0 %v569
    %810 = vmatprep.mubr.bf16.mxu0 %v638
    %811 = vmatmul.mubr.bf16.gmra.mrb[0].mxu0 %v637
    %v812 = vpop.f32.mrb[0].mxu0
    %v813 = vadd.f32 %v772, %v812
    %v814 = vpop.f32.mrb[0].mxu0
    %v815 = vadd.f32 %v774, %v814
    %v816 = vpop.f32.mrb[0].mxu0
    %v817 = vpop.f32.mrb[0].mxu0
    %818 = vdwg.mxu0
    %v819 = vmax.f32 %v731, 0.0
    %v820 = vmax.f32 %v733, 0.0
    %v821 = vmax.f32 %v813, 0.0
    %v822 = vmax.f32 %v815, 0.0
    %v823 = vpack.c.bf16 %v819, %v819
    %v824 = vpack.c.bf16 %v820, %v820
    %v825 = vpack.c.bf16 %v821, %v821
    %v826 = vpack.c.bf16 %v822, %v822
    %v827 = vlaneseq
    %v828 = vshrl.u32 %v827, 7
    %v829 = vsub.s32 2, %v828
    %v830 = vrot.slane %v90, %v829
    %v831 = vlaneseq
    %v832 = vshrl.u32 %v831, 7
    %v833 = vsub.s32 2, %v832
    %v834 = vrot.slane %v91, %v833
    %835 = vmatprep.subr.bf16.mxu0 %v572
    %836 = vmatpush1.bf16.msra.mxu0 %v571
    %837 = vmatprep.subr.bf16.mxu0 %v574
    %838 = vmatpush1.bf16.msra.mxu0 %v573
    %839 = vmatprep.subr.bf16.mxu0 %v576
    %840 = vmatpush1.bf16.msra.mxu0 %v575
    %841 = vmatprep.subr.bf16.mxu0 %v578
    %842 = vmatpush1.bf16.msra.mxu0 %v577
    %843 = vmatprep.subr.bf16.mxu0 %v580
    %844 = vmatpush1.bf16.msra.mxu0 %v579
    %845 = vmatprep.subr.bf16.mxu0 %v582
    %846 = vmatpush1.bf16.msra.mxu0 %v581
    %847 = vmatprep.subr.bf16.mxu0 %v584
    %848 = vmatpush1.bf16.msra.mxu0 %v583
    %849 = vmatprep.subr.bf16.mxu0 %v586
    %850 = vmatpush1.bf16.msra.mxu0 %v585
    %851 = vmatprep.subr.bf16.mxu0 %v588
    %852 = vmatpush1.bf16.msra.mxu0 %v587
    %853 = vmatprep.subr.bf16.mxu0 %v590
    %854 = vmatpush1.bf16.msra.mxu0 %v589
    %855 = vmatprep.subr.bf16.mxu0 %v592
    %856 = vmatpush1.bf16.msra.mxu0 %v591
    %857 = vmatprep.subr.bf16.mxu0 %v594
    %858 = vmatpush1.bf16.msra.mxu0 %v593
    %859 = vmatprep.subr.bf16.mxu0 %v596
    %860 = vmatpush1.bf16.msra.mxu0 %v595
    %861 = vmatprep.subr.bf16.mxu0 %v598
    %862 = vmatpush1.bf16.msra.mxu0 %v597
    %863 = vmatprep.subr.bf16.mxu0 %v600
    %864 = vmatpush1.bf16.msra.mxu0 %v599
    %865 = vmatprep.subr.bf16.mxu0 %v602
    %866 = vmatpush1.bf16.msra.mxu0 %v601
    %867 = vmatprep.mubr.bf16.mxu0 %v824
    %868 = vmatmul.mubr.bf16.gmra.mrb[0].mxu0 %v823
    %v869 = vpop.f32.mrb[0].mxu0
    %v870 = vadd.f32 %v830, %v869
    %v871 = vpop.f32.mrb[0].mxu0
    %v872 = vadd.f32 %v834, %v871
    %v873 = vpop.f32.mrb[0].mxu0
    %v874 = vpop.f32.mrb[0].mxu0
    %875 = vdwg.mxu0
    %876 = vmatprep.subr.bf16.mxu0 %v604
    %877 = vmatpush1.bf16.msra.mxu0 %v603
    %878 = vmatprep.subr.bf16.mxu0 %v606
    %879 = vmatpush1.bf16.msra.mxu0 %v605
    %880 = vmatprep.subr.bf16.mxu0 %v608
    %881 = vmatpush1.bf16.msra.mxu0 %v607
    %882 = vmatprep.subr.bf16.mxu0 %v610
    %883 = vmatpush1.bf16.msra.mxu0 %v609
    %884 = vmatprep.subr.bf16.mxu0 %v612
    %885 = vmatpush1.bf16.msra.mxu0 %v611
    %886 = vmatprep.subr.bf16.mxu0 %v614
    %887 = vmatpush1.bf16.msra.mxu0 %v613
    %888 = vmatprep.subr.bf16.mxu0 %v616
    %889 = vmatpush1.bf16.msra.mxu0 %v615
    %890 = vmatprep.subr.bf16.mxu0 %v618
    %891 = vmatpush1.bf16.msra.mxu0 %v617
    %892 = vmatprep.subr.bf16.mxu0 %v620
    %893 = vmatpush1.bf16.msra.mxu0 %v619
    %894 = vmatprep.subr.bf16.mxu0 %v622
    %895 = vmatpush1.bf16.msra.mxu0 %v621
    %896 = vmatprep.subr.bf16.mxu0 %v624
    %897 = vmatpush1.bf16.msra.mxu0 %v623
    %898 = vmatprep.subr.bf16.mxu0 %v626
    %899 = vmatpush1.bf16.msra.mxu0 %v625
    %900 = vmatprep.subr.bf16.mxu0 %v628
    %901 = vmatpush1.bf16.msra.mxu0 %v627
    %902 = vmatprep.subr.bf16.mxu0 %v630
    %903 = vmatpush1.bf16.msra.mxu0 %v629
    %904 = vmatprep.subr.bf16.mxu0 %v632
    %905 = vmatpush1.bf16.msra.mxu0 %v631
    %906 = vmatprep.subr.bf16.mxu0 %v634
    %907 = vmatpush1.bf16.msra.mxu0 %v633
    %908 = vmatprep.mubr.bf16.mxu0 %v826
    %909 = vmatmul.mubr.bf16.gmra.mrb[0].mxu0 %v825
    %v910 = vpop.f32.mrb[0].mxu0
    %v911 = vadd.f32 %v870, %v910
    %v912 = vpop.f32.mrb[0].mxu0
    %v913 = vadd.f32 %v872, %v912
    %v914 = vpop.f32.mrb[0].mxu0
    %v915 = vpop.f32.mrb[0].mxu0
    %916 = vdwg.mxu0
    %s917 = smul.u32 4, 46
    %s918 = smul.u32 %s917, 4
    %s919 = sshll.u32 %s918, 4
    %920 = dma.done %s55, %s919
    %v921 = vld [vmem:[#allocation3] sm:$0xff]
    %v922 = vld [vmem:[#allocation3 + $0x8] sm:$0xff]
    %v923 = vld [vmem:[#allocation3 + $0x10] sm:$0xff]
    %v924 = vld [vmem:[#allocation3 + $0x18] sm:$0xff]
    %v925 = vld [vmem:[#allocation3 + $0x20] sm:$0xff]
    %v926 = vld [vmem:[#allocation3 + $0x28] sm:$0xff]
    %v927 = vld [vmem:[#allocation3 + $0x30] sm:$0xff]
    %v928 = vld [vmem:[#allocation3 + $0x38] sm:$0xff]
    %v929 = vld [vmem:[#allocation3 + $0x40] sm:$0xff]
    %v930 = vld [vmem:[#allocation3 + $0x48] sm:$0xff]
    %v931 = vld [vmem:[#allocation3 + $0x50] sm:$0xff]
    %v932 = vld [vmem:[#allocation3 + $0x58] sm:$0xff]
    %v933 = vld [vmem:[#allocation3 + $0x60] sm:$0xff]
    %v934 = vld [vmem:[#allocation3 + $0x68] sm:$0xff]
    %v935 = vld [vmem:[#allocation3 + $0x70] sm:$0xff]
    %v936 = vld [vmem:[#allocation3 + $0x78] sm:$0xff]
    %v937 = vld [vmem:[#allocation3 + $0x80] sm:$0xff]
    %v938 = vld [vmem:[#allocation3 + $0x88] sm:$0xff]
    %v939 = vld [vmem:[#allocation3 + $0x90] sm:$0xff]
    %v940 = vld [vmem:[#allocation3 + $0x98] sm:$0xff]
    %v941 = vld [vmem:[#allocation3 + $0xa0] sm:$0xff]
    %v942 = vld [vmem:[#allocation3 + $0xa8] sm:$0xff]
    %v943 = vld [vmem:[#allocation3 + $0xb0] sm:$0xff]
    %v944 = vld [vmem:[#allocation3 + $0xb8] sm:$0xff]
    %v945 = vld [vmem:[#allocation3 + $0xc0] sm:$0xff]
    %v946 = vld [vmem:[#allocation3 + $0xc8] sm:$0xff]
    %v947 = vld [vmem:[#allocation3 + $0xd0] sm:$0xff]
    %v948 = vld [vmem:[#allocation3 + $0xd8] sm:$0xff]
    %v949 = vld [vmem:[#allocation3 + $0xe0] sm:$0xff]
    %v950 = vld [vmem:[#allocation3 + $0xe8] sm:$0xff]
    %v951 = vld [vmem:[#allocation3 + $0xf0] sm:$0xff]
    %v952 = vld [vmem:[#allocation3 + $0xf8] sm:$0xff]
    %v953 = vld [vmem:[#allocation3 + $0x100] sm:$0xff]
    %v954 = vld [vmem:[#allocation3 + $0x108] sm:$0xff]
    %v955 = vld [vmem:[#allocation3 + $0x110] sm:$0xff]
    %v956 = vld [vmem:[#allocation3 + $0x118] sm:$0xff]
    %v957 = vld [vmem:[#allocation3 + $0x120] sm:$0xff]
    %v958 = vld [vmem:[#allocation3 + $0x128] sm:$0xff]
    %v959 = vld [vmem:[#allocation3 + $0x130] sm:$0xff]
    %v960 = vld [vmem:[#allocation3 + $0x138] sm:$0xff]
    %v961 = vld [vmem:[#allocation3 + $0x140] sm:$0xff]
    %v962 = vld [vmem:[#allocation3 + $0x148] sm:$0xff]
    %v963 = vld [vmem:[#allocation3 + $0x150] sm:$0xff]
    %v964 = vld [vmem:[#allocation3 + $0x158] sm:$0xff]
    %v965 = vld [vmem:[#allocation3 + $0x160] sm:$0xff]
    %v966 = vld [vmem:[#allocation3 + $0x168] sm:$0xff]
    %v967 = vld [vmem:[#allocation3 + $0x170] sm:$0xff]
    %v968 = vld [vmem:[#allocation3 + $0x178] sm:$0xff]
    %v969 = vld [vmem:[#allocation3 + $0x180] sm:$0xff]
    %v970 = vld [vmem:[#allocation3 + $0x188] sm:$0xff]
    %v971 = vld [vmem:[#allocation3 + $0x190] sm:$0xff]
    %v972 = vld [vmem:[#allocation3 + $0x198] sm:$0xff]
    %v973 = vld [vmem:[#allocation3 + $0x1a0] sm:$0xff]
    %v974 = vld [vmem:[#allocation3 + $0x1a8] sm:$0xff]
    %v975 = vld [vmem:[#allocation3 + $0x1b0] sm:$0xff]
    %v976 = vld [vmem:[#allocation3 + $0x1b8] sm:$0xff]
    %v977 = vld [vmem:[#allocation3 + $0x1c0] sm:$0xff]
    %v978 = vld [vmem:[#allocation3 + $0x1c8] sm:$0xff]
    %v979 = vld [vmem:[#allocation3 + $0x1d0] sm:$0xff]
    %v980 = vld [vmem:[#allocation3 + $0x1d8] sm:$0xff]
    %v981 = vld [vmem:[#allocation3 + $0x1e0] sm:$0xff]
    %v982 = vld [vmem:[#allocation3 + $0x1e8] sm:$0xff]
    %v983 = vld [vmem:[#allocation3 + $0x1f0] sm:$0xff]
    %v984 = vld [vmem:[#allocation3 + $0x1f8] sm:$0xff]
    %v985 = vld [vmem:[#allocation3 + $0x200] sm:$0xff]
    %v986 = vld [vmem:[#allocation3 + $0x208] sm:$0xff]
    %v987 = vld [vmem:[#allocation3 + $0x210] sm:$0xff]
    %v988 = vld [vmem:[#allocation3 + $0x218] sm:$0xff]
    %v989 = vld [vmem:[#allocation3 + $0x220] sm:$0xff]
    %v990 = vld [vmem:[#allocation3 + $0x228] sm:$0xff]
    %v991 = vld [vmem:[#allocation3 + $0x230] sm:$0xff]
    %v992 = vld [vmem:[#allocation3 + $0x238] sm:$0xff]
    %v993 = vld [vmem:[#allocation3 + $0x240] sm:$0xff]
    %v994 = vld [vmem:[#allocation3 + $0x248] sm:$0xff]
    %v995 = vld [vmem:[#allocation3 + $0x250] sm:$0xff]
    %v996 = vld [vmem:[#allocation3 + $0x258] sm:$0xff]
    %v997 = vld [vmem:[#allocation3 + $0x260] sm:$0xff]
    %v998 = vld [vmem:[#allocation3 + $0x268] sm:$0xff]
    %v999 = vld [vmem:[#allocation3 + $0x270] sm:$0xff]
    %v1000 = vld [vmem:[#allocation3 + $0x278] sm:$0xff]
    %v1001 = vld [vmem:[#allocation3 + $0x280] sm:$0xff]
    %v1002 = vld [vmem:[#allocation3 + $0x288] sm:$0xff]
    %v1003 = vld [vmem:[#allocation3 + $0x290] sm:$0xff]
    %v1004 = vld [vmem:[#allocation3 + $0x298] sm:$0xff]
    %v1005 = vld [vmem:[#allocation3 + $0x2a0] sm:$0xff]
    %v1006 = vld [vmem:[#allocation3 + $0x2a8] sm:$0xff]
    %v1007 = vld [vmem:[#allocation3 + $0x2b0] sm:$0xff]
    %v1008 = vld [vmem:[#allocation3 + $0x2b8] sm:$0xff]
    %v1009 = vld [vmem:[#allocation3 + $0x2c0] sm:$0xff]
    %v1010 = vld [vmem:[#allocation3 + $0x2c8] sm:$0xff]
    %v1011 = vld [vmem:[#allocation3 + $0x2d0] sm:$0xff]
    %v1012 = vld [vmem:[#allocation3 + $0x2d8] sm:$0xff]
    %v1013 = vld [vmem:[#allocation2 + $0x30] sm:$0xff]
    %v1014 = vld [vmem:[#allocation2 + $0x38] sm:$0xff]
    %v1015 = vld [vmem:[#allocation2 + $0x70] sm:$0xff]
    %v1016 = vld [vmem:[#allocation2 + $0x78] sm:$0xff]
    %v1017 = vld [vmem:[#allocation2 + $0xb0] sm:$0xff]
    %v1018 = vld [vmem:[#allocation2 + $0xb8] sm:$0xff]
    %v1019 = vld [vmem:[#allocation2 + $0xf0] sm:$0xff]
    %v1020 = vld [vmem:[#allocation2 + $0xf8] sm:$0xff]
    %v1021 = vld [vmem:[#allocation2 + $0x130] sm:$0xff]
    %v1022 = vld [vmem:[#allocation2 + $0x138] sm:$0xff]
    %v1023 = vld [vmem:[#allocation2 + $0x170] sm:$0xff]
    %v1024 = vld [vmem:[#allocation2 + $0x178] sm:$0xff]
    %v1025 = vld [vmem:[#allocation2 + $0x1b0] sm:$0xff]
    %v1026 = vld [vmem:[#allocation2 + $0x1b8] sm:$0xff]
    %v1027 = vld [vmem:[#allocation2 + $0x1f0] sm:$0xff]
    %v1028 = vld [vmem:[#allocation2 + $0x1f8] sm:$0xff]
    %v1029 = vld [vmem:[#allocation2 + $0x230] sm:$0xff]
    %v1030 = vld [vmem:[#allocation2 + $0x238] sm:$0xff]
    %v1031 = vld [vmem:[#allocation2 + $0x270] sm:$0xff]
    %v1032 = vld [vmem:[#allocation2 + $0x278] sm:$0xff]
    %v1033 = vld [vmem:[#allocation2 + $0x2b0] sm:$0xff]
    %v1034 = vld [vmem:[#allocation2 + $0x2b8] sm:$0xff]
    %v1035 = vld [vmem:[#allocation2 + $0x2f0] sm:$0xff]
    %v1036 = vld [vmem:[#allocation2 + $0x2f8] sm:$0xff]
    %v1037 = vld [vmem:[#allocation2 + $0x330] sm:$0xff]
    %v1038 = vld [vmem:[#allocation2 + $0x338] sm:$0xff]
    %v1039 = vld [vmem:[#allocation2 + $0x370] sm:$0xff]
    %v1040 = vld [vmem:[#allocation2 + $0x378] sm:$0xff]
    %v1041 = vld [vmem:[#allocation2 + $0x3b0] sm:$0xff]
    %v1042 = vld [vmem:[#allocation2 + $0x3b8] sm:$0xff]
    %v1043 = vld [vmem:[#allocation2 + $0x3f0] sm:$0xff]
    %v1044 = vld [vmem:[#allocation2 + $0x3f8] sm:$0xff]
    %v1045 = vld [vmem:[#allocation2 + $0x430] sm:$0xff]
    %v1046 = vld [vmem:[#allocation2 + $0x438] sm:$0xff]
    %v1047 = vld [vmem:[#allocation2 + $0x470] sm:$0xff]
    %v1048 = vld [vmem:[#allocation2 + $0x478] sm:$0xff]
    %v1049 = vld [vmem:[#allocation2 + $0x4b0] sm:$0xff]
    %v1050 = vld [vmem:[#allocation2 + $0x4b8] sm:$0xff]
    %v1051 = vld [vmem:[#allocation2 + $0x4f0] sm:$0xff]
    %v1052 = vld [vmem:[#allocation2 + $0x4f8] sm:$0xff]
    %v1053 = vld [vmem:[#allocation2 + $0x530] sm:$0xff]
    %v1054 = vld [vmem:[#allocation2 + $0x538] sm:$0xff]
    %v1055 = vld [vmem:[#allocation2 + $0x570] sm:$0xff]
    %v1056 = vld [vmem:[#allocation2 + $0x578] sm:$0xff]
    %v1057 = vld [vmem:[#allocation2 + $0x5b0] sm:$0xff]
    %v1058 = vld [vmem:[#allocation2 + $0x5b8] sm:$0xff]
    %v1059 = vld [vmem:[#allocation2 + $0x5f0] sm:$0xff]
    %v1060 = vld [vmem:[#allocation2 + $0x5f8] sm:$0xff]
    %v1061 = vld [vmem:[#allocation2 + $0x630] sm:$0xff]
    %v1062 = vld [vmem:[#allocation2 + $0x638] sm:$0xff]
    %v1063 = vld [vmem:[#allocation2 + $0x670] sm:$0xff]
    %v1064 = vld [vmem:[#allocation2 + $0x678] sm:$0xff]
    %v1065 = vld [vmem:[#allocation2 + $0x6b0] sm:$0xff]
    %v1066 = vld [vmem:[#allocation2 + $0x6b8] sm:$0xff]
    %v1067 = vld [vmem:[#allocation2 + $0x6f0] sm:$0xff]
    %v1068 = vld [vmem:[#allocation2 + $0x6f8] sm:$0xff]
    %v1069 = vld [vmem:[#allocation2 + $0x730] sm:$0xff]
    %v1070 = vld [vmem:[#allocation2 + $0x738] sm:$0xff]
    %v1071 = vld [vmem:[#allocation2 + $0x770] sm:$0xff]
    %v1072 = vld [vmem:[#allocation2 + $0x778] sm:$0xff]
    %v1073 = vld [vmem:[#allocation2 + $0x7b0] sm:$0xff]
    %v1074 = vld [vmem:[#allocation2 + $0x7b8] sm:$0xff]
    %v1075 = vld [vmem:[#allocation2 + $0x7f0] sm:$0xff]
    %v1076 = vld [vmem:[#allocation2 + $0x7f8] sm:$0xff]
    %1079 = vrot.lane.b32.xlu0 %v911, 64
    %v1080 = vpop.permute.xlu0 %1079
    %1081 = vrot.lane.b32.xlu0 %v913, 64
    %v1082 = vpop.permute.xlu0 %1081
    %vm1083 = vcmask 523264
    %v1084 = vsel %vm1083, %v1080, %v1082
    %1089 = vrot.lane.b32.xlu0 %v95, 64
    %v1090 = vpop.permute.xlu0 %1089
    %v1092 = vsel %vm1083, %v291, %v1080
    %v1093 = vsel %vm1083, %v1082, %v1090
    %v1094 = vpack.c.bf16 %v1092, %v1092
    %v1095 = vpack.c.bf16 %v1084, %v1084
    %v1096 = vpack.c.bf16 %v1093, %v1093
    %v1097 = vlaneseq
    %v1098 = vshrl.u32 %v1097, 7
    %v1099 = vsub.s32 3, %v1098
    %v1100 = vrot.slane %v90, %v1099
    %v1101 = vlaneseq
    %v1102 = vshrl.u32 %v1101, 7
    %v1103 = vsub.s32 3, %v1102
    %v1104 = vrot.slane %v91, %v1103
    %v1105 = vlaneseq
    %v1106 = vshrl.u32 %v1105, 7
    %v1107 = vsub.s32 3, %v1106
    %v1108 = vrot.slane %v92, %v1107
    %v1109 = vlaneseq
    %v1110 = vshrl.u32 %v1109, 7
    %v1111 = vsub.s32 3, %v1110
    %v1112 = vrot.slane %v93, %v1111
    %vm1113 = vcmask 916480
    %v1115 = vsel %vm1113, %v1096, 0
    %1117 = vmatprep.subr.bf16.mxu0 %v922
    %1118 = vmatpush1.bf16.msra.mxu0 %v921
    %1119 = vmatprep.subr.bf16.mxu0 %v926
    %1120 = vmatpush1.bf16.msra.mxu0 %v925
    %1121 = vmatprep.subr.bf16.mxu0 %v930
    %1122 = vmatpush1.bf16.msra.mxu0 %v929
    %1123 = vmatprep.subr.bf16.mxu0 %v934
    %1124 = vmatpush1.bf16.msra.mxu0 %v933
    %1125 = vmatprep.subr.bf16.mxu0 %v938
    %1126 = vmatpush1.bf16.msra.mxu0 %v937
    %1127 = vmatprep.subr.bf16.mxu0 %v942
    %1128 = vmatpush1.bf16.msra.mxu0 %v941
    %1129 = vmatprep.subr.bf16.mxu0 %v946
    %1130 = vmatpush1.bf16.msra.mxu0 %v945
    %1131 = vmatprep.subr.bf16.mxu0 %v950
    %1132 = vmatpush1.bf16.msra.mxu0 %v949
    %1133 = vmatprep.subr.bf16.mxu0 %v954
    %1134 = vmatpush1.bf16.msra.mxu0 %v953
    %1135 = vmatprep.subr.bf16.mxu0 %v958
    %1136 = vmatpush1.bf16.msra.mxu0 %v957
    %1137 = vmatprep.subr.bf16.mxu0 %v962
    %1138 = vmatpush1.bf16.msra.mxu0 %v961
    %1139 = vmatprep.subr.bf16.mxu0 %v966
    %1140 = vmatpush1.bf16.msra.mxu0 %v965
    %1141 = vmatprep.subr.bf16.mxu0 %v970
    %1142 = vmatpush1.bf16.msra.mxu0 %v969
    %1143 = vmatprep.subr.bf16.mxu0 %v974
    %1144 = vmatpush1.bf16.msra.mxu0 %v973
    %1145 = vmatprep.subr.bf16.mxu0 %v978
    %1146 = vmatpush1.bf16.msra.mxu0 %v977
    %1147 = vmatprep.subr.bf16.mxu0 %v982
    %1148 = vmatpush1.bf16.msra.mxu0 %v981
    %1149 = vmatprep.mubr.bf16.mxu0 %v1095
    %1150 = vmatmul.mubr.bf16.gmra.mrb[0].mxu0 %v1094
    %v1151 = vpop.f32.mrb[0].mxu0
    %v1152 = vadd.f32 %v1100, %v1151
    %v1153 = vpop.f32.mrb[0].mxu0
    %v1154 = vadd.f32 %v1104, %v1153
    %v1155 = vpop.f32.mrb[0].mxu0
    %v1156 = vpop.f32.mrb[0].mxu0
    %1157 = vdwg.mxu0
    %1158 = vmatprep.subr.bf16.mxu0 %v986
    %1159 = vmatpush1.bf16.msra.mxu0 %v985
    %1160 = vmatprep.subr.bf16.mxu0 %v990
    %1161 = vmatpush1.bf16.msra.mxu0 %v989
    %1162 = vmatprep.subr.bf16.mxu0 %v994
    %1163 = vmatpush1.bf16.msra.mxu0 %v993
    %1164 = vmatprep.subr.bf16.mxu0 %v998
    %1165 = vmatpush1.bf16.msra.mxu0 %v997
    %1166 = vmatprep.subr.bf16.mxu0 %v1002
    %1167 = vmatpush1.bf16.msra.mxu0 %v1001
    %1168 = vmatprep.subr.bf16.mxu0 %v1006
    %1169 = vmatpush1.bf16.msra.mxu0 %v1005
    %1170 = vmatprep.subr.bf16.mxu0 %v1010
    %1171 = vmatpush1.bf16.msra.mxu0 %v1009
    %1172 = vmatprep.subr.bf16.mxu0 0
    %1173 = vmatpush1.bf16.msra.mxu0 0
    %1174 = vmatprep.subr.bf16.mxu0 0
    %1175 = vmatpush1.bf16.msra.mxu0 0
    %1176 = vmatprep.subr.bf16.mxu0 0
    %1177 = vmatpush1.bf16.msra.mxu0 0
    %1178 = vmatprep.subr.bf16.mxu0 0
    %1179 = vmatpush1.bf16.msra.mxu0 0
    %1180 = vmatprep.subr.bf16.mxu0 0
    %1181 = vmatpush1.bf16.msra.mxu0 0
    %1182 = vmatprep.subr.bf16.mxu0 0
    %1183 = vmatpush1.bf16.msra.mxu0 0
    %1184 = vmatprep.subr.bf16.mxu0 0
    %1185 = vmatpush1.bf16.msra.mxu0 0
    %1186 = vmatprep.subr.bf16.mxu0 0
    %1187 = vmatpush1.bf16.msra.mxu0 0
    %1188 = vmatprep.subr.bf16.mxu0 0
    %1189 = vmatpush1.bf16.msra.mxu0 0
    %1190 = vmatprep.mubr.bf16.mxu0 0
    %1191 = vmatmul.mubr.bf16.gmra.mrb[0].mxu0 %v1115
    %v1192 = vpop.f32.mrb[0].mxu0
    %v1193 = vadd.f32 %v1152, %v1192
    %v1194 = vpop.f32.mrb[0].mxu0
    %v1195 = vadd.f32 %v1154, %v1194
    %v1196 = vpop.f32.mrb[0].mxu0
    %v1197 = vpop.f32.mrb[0].mxu0
    %1198 = vdwg.mxu0
    %1199 = vmatprep.subr.bf16.mxu0 %v924
    %1200 = vmatpush1.bf16.msra.mxu0 %v923
    %1201 = vmatprep.subr.bf16.mxu0 %v928
    %1202 = vmatpush1.bf16.msra.mxu0 %v927
    %1203 = vmatprep.subr.bf16.mxu0 %v932
    %1204 = vmatpush1.bf16.msra.mxu0 %v931
    %1205 = vmatprep.subr.bf16.mxu0 %v936
    %1206 = vmatpush1.bf16.msra.mxu0 %v935
    %1207 = vmatprep.subr.bf16.mxu0 %v940
    %1208 = vmatpush1.bf16.msra.mxu0 %v939
    %1209 = vmatprep.subr.bf16.mxu0 %v944
    %1210 = vmatpush1.bf16.msra.mxu0 %v943
    %1211 = vmatprep.subr.bf16.mxu0 %v948
    %1212 = vmatpush1.bf16.msra.mxu0 %v947
    %1213 = vmatprep.subr.bf16.mxu0 %v952
    %1214 = vmatpush1.bf16.msra.mxu0 %v951
    %1215 = vmatprep.subr.bf16.mxu0 %v956
    %1216 = vmatpush1.bf16.msra.mxu0 %v955
    %1217 = vmatprep.subr.bf16.mxu0 %v960
    %1218 = vmatpush1.bf16.msra.mxu0 %v959
    %1219 = vmatprep.subr.bf16.mxu0 %v964
    %1220 = vmatpush1.bf16.msra.mxu0 %v963
    %1221 = vmatprep.subr.bf16.mxu0 %v968
    %1222 = vmatpush1.bf16.msra.mxu0 %v967
    %1223 = vmatprep.subr.bf16.mxu0 %v972
    %1224 = vmatpush1.bf16.msra.mxu0 %v971
    %1225 = vmatprep.subr.bf16.mxu0 %v976
    %1226 = vmatpush1.bf16.msra.mxu0 %v975
    %1227 = vmatprep.subr.bf16.mxu0 %v980
    %1228 = vmatpush1.bf16.msra.mxu0 %v979
    %1229 = vmatprep.subr.bf16.mxu0 %v984
    %1230 = vmatpush1.bf16.msra.mxu0 %v983
    %1231 = vmatprep.mubr.bf16.mxu0 %v1095
    %1232 = vmatmul.mubr.bf16.gmra.mrb[0].mxu0 %v1094
    %v1233 = vpop.f32.mrb[0].mxu0
    %v1234 = vadd.f32 %v1108, %v1233
    %v1235 = vpop.f32.mrb[0].mxu0
    %v1236 = vadd.f32 %v1112, %v1235
    %v1237 = vpop.f32.mrb[0].mxu0
    %v1238 = vpop.f32.mrb[0].mxu0
    %1239 = vdwg.mxu0
    %1240 = vmatprep.subr.bf16.mxu0 %v988
    %1241 = vmatpush1.bf16.msra.mxu0 %v987
    %1242 = vmatprep.subr.bf16.mxu0 %v992
    %1243 = vmatpush1.bf16.msra.mxu0 %v991
    %1244 = vmatprep.subr.bf16.mxu0 %v996
    %1245 = vmatpush1.bf16.msra.mxu0 %v995
    %1246 = vmatprep.subr.bf16.mxu0 %v1000
    %1247 = vmatpush1.bf16.msra.mxu0 %v999
    %1248 = vmatprep.subr.bf16.mxu0 %v1004
    %1249 = vmatpush1.bf16.msra.mxu0 %v1003
    %1250 = vmatprep.subr.bf16.mxu0 %v1008
    %1251 = vmatpush1.bf16.msra.mxu0 %v1007
    %1252 = vmatprep.subr.bf16.mxu0 %v1012
    %1253 = vmatpush1.bf16.msra.mxu0 %v1011
    %1254 = vmatprep.subr.bf16.mxu0 0
    %1255 = vmatpush1.bf16.msra.mxu0 0
    %1256 = vmatprep.subr.bf16.mxu0 0
    %1257 = vmatpush1.bf16.msra.mxu0 0
    %1258 = vmatprep.subr.bf16.mxu0 0
    %1259 = vmatpush1.bf16.msra.mxu0 0
    %1260 = vmatprep.subr.bf16.mxu0 0
    %1261 = vmatpush1.bf16.msra.mxu0 0
    %1262 = vmatprep.subr.bf16.mxu0 0
    %1263 = vmatpush1.bf16.msra.mxu0 0
    %1264 = vmatprep.subr.bf16.mxu0 0
    %1265 = vmatpush1.bf16.msra.mxu0 0
    %1266 = vmatprep.subr.bf16.mxu0 0
    %1267 = vmatpush1.bf16.msra.mxu0 0
    %1268 = vmatprep.subr.bf16.mxu0 0
    %1269 = vmatpush1.bf16.msra.mxu0 0
    %1270 = vmatprep.subr.bf16.mxu0 0
    %1271 = vmatpush1.bf16.msra.mxu0 0
    %1272 = vmatprep.mubr.bf16.mxu0 0
    %1273 = vmatmul.mubr.bf16.gmra.mrb[0].mxu0 %v1115
    %v1274 = vpop.f32.mrb[0].mxu0
    %v1275 = vadd.f32 %v1234, %v1274
    %v1276 = vpop.f32.mrb[0].mxu0
    %v1277 = vadd.f32 %v1236, %v1276
    %v1278 = vpop.f32.mrb[0].mxu0
    %v1279 = vpop.f32.mrb[0].mxu0
    %1280 = vdwg.mxu0
    %v1281 = vmax.f32 %v1193, 0.0
    %v1282 = vmax.f32 %v1195, 0.0
    %v1283 = vmax.f32 %v1275, 0.0
    %v1284 = vmax.f32 %v1277, 0.0
    %v1285 = vpack.c.bf16 %v1281, %v1281
    %v1286 = vpack.c.bf16 %v1282, %v1282
    %v1287 = vpack.c.bf16 %v1283, %v1283
    %v1288 = vpack.c.bf16 %v1284, %v1284
    %v1289 = vlaneseq
    %v1290 = vshrl.u32 %v1289, 7
    %v1291 = vsub.s32 4, %v1290
    %v1292 = vrot.slane %v90, %v1291
    %v1293 = vlaneseq
    %v1294 = vshrl.u32 %v1293, 7
    %v1295 = vsub.s32 4, %v1294
    %v1296 = vrot.slane %v91, %v1295
    %1297 = vmatprep.subr.bf16.mxu0 %v1014
    %1298 = vmatpush1.bf16.msra.mxu0 %v1013
    %1299 = vmatprep.subr.bf16.mxu0 %v1016
    %1300 = vmatpush1.bf16.msra.mxu0 %v1015
    %1301 = vmatprep.subr.bf16.mxu0 %v1018
    %1302 = vmatpush1.bf16.msra.mxu0 %v1017
    %1303 = vmatprep.subr.bf16.mxu0 %v1020
    %1304 = vmatpush1.bf16.msra.mxu0 %v1019
    %1305 = vmatprep.subr.bf16.mxu0 %v1022
    %1306 = vmatpush1.bf16.msra.mxu0 %v1021
    %1307 = vmatprep.subr.bf16.mxu0 %v1024
    %1308 = vmatpush1.bf16.msra.mxu0 %v1023
    %1309 = vmatprep.subr.bf16.mxu0 %v1026
    %1310 = vmatpush1.bf16.msra.mxu0 %v1025
    %1311 = vmatprep.subr.bf16.mxu0 %v1028
    %1312 = vmatpush1.bf16.msra.mxu0 %v1027
    %1313 = vmatprep.subr.bf16.mxu0 %v1030
    %1314 = vmatpush1.bf16.msra.mxu0 %v1029
    %1315 = vmatprep.subr.bf16.mxu0 %v1032
    %1316 = vmatpush1.bf16.msra.mxu0 %v1031
    %1317 = vmatprep.subr.bf16.mxu0 %v1034
    %1318 = vmatpush1.bf16.msra.mxu0 %v1033
    %1319 = vmatprep.subr.bf16.mxu0 %v1036
    %1320 = vmatpush1.bf16.msra.mxu0 %v1035
    %1321 = vmatprep.subr.bf16.mxu0 %v1038
    %1322 = vmatpush1.bf16.msra.mxu0 %v1037
    %1323 = vmatprep.subr.bf16.mxu0 %v1040
    %1324 = vmatpush1.bf16.msra.mxu0 %v1039
    %1325 = vmatprep.subr.bf16.mxu0 %v1042
    %1326 = vmatpush1.bf16.msra.mxu0 %v1041
    %1327 = vmatprep.subr.bf16.mxu0 %v1044
    %1328 = vmatpush1.bf16.msra.mxu0 %v1043
    %1329 = vmatprep.mubr.bf16.mxu0 %v1286
    %1330 = vmatmul.mubr.bf16.gmra.mrb[0].mxu0 %v1285
    %v1331 = vpop.f32.mrb[0].mxu0
    %v1332 = vadd.f32 %v1292, %v1331
    %v1333 = vpop.f32.mrb[0].mxu0
    %v1334 = vadd.f32 %v1296, %v1333
    %v1335 = vpop.f32.mrb[0].mxu0
    %v1336 = vpop.f32.mrb[0].mxu0
    %1337 = vdwg.mxu0
    %1338 = vmatprep.subr.bf16.mxu0 %v1046
    %1339 = vmatpush1.bf16.msra.mxu0 %v1045
    %1340 = vmatprep.subr.bf16.mxu0 %v1048
    %1341 = vmatpush1.bf16.msra.mxu0 %v1047
    %1342 = vmatprep.subr.bf16.mxu0 %v1050
    %1343 = vmatpush1.bf16.msra.mxu0 %v1049
    %1344 = vmatprep.subr.bf16.mxu0 %v1052
    %1345 = vmatpush1.bf16.msra.mxu0 %v1051
    %1346 = vmatprep.subr.bf16.mxu0 %v1054
    %1347 = vmatpush1.bf16.msra.mxu0 %v1053
    %1348 = vmatprep.subr.bf16.mxu0 %v1056
    %1349 = vmatpush1.bf16.msra.mxu0 %v1055
    %1350 = vmatprep.subr.bf16.mxu0 %v1058
    %1351 = vmatpush1.bf16.msra.mxu0 %v1057
    %1352 = vmatprep.subr.bf16.mxu0 %v1060
    %1353 = vmatpush1.bf16.msra.mxu0 %v1059
    %1354 = vmatprep.subr.bf16.mxu0 %v1062
    %1355 = vmatpush1.bf16.msra.mxu0 %v1061
    %1356 = vmatprep.subr.bf16.mxu0 %v1064
    %1357 = vmatpush1.bf16.msra.mxu0 %v1063
    %1358 = vmatprep.subr.bf16.mxu0 %v1066
    %1359 = vmatpush1.bf16.msra.mxu0 %v1065
    %1360 = vmatprep.subr.bf16.mxu0 %v1068
    %1361 = vmatpush1.bf16.msra.mxu0 %v1067
    %1362 = vmatprep.subr.bf16.mxu0 %v1070
    %1363 = vmatpush1.bf16.msra.mxu0 %v1069
    %1364 = vmatprep.subr.bf16.mxu0 %v1072
    %1365 = vmatpush1.bf16.msra.mxu0 %v1071
    %1366 = vmatprep.subr.bf16.mxu0 %v1074
    %1367 = vmatpush1.bf16.msra.mxu0 %v1073
    %1368 = vmatprep.subr.bf16.mxu0 %v1076
    %1369 = vmatpush1.bf16.msra.mxu0 %v1075
    %1370 = vmatprep.mubr.bf16.mxu0 %v1288
    %1371 = vmatmul.mubr.bf16.gmra.mrb[0].mxu0 %v1287
    %v1372 = vpop.f32.mrb[0].mxu0
    %v1373 = vadd.f32 %v1332, %v1372
    %v1374 = vpop.f32.mrb[0].mxu0
    %v1375 = vadd.f32 %v1334, %v1374
    %v1376 = vpop.f32.mrb[0].mxu0
    %v1377 = vpop.f32.mrb[0].mxu0
    %1378 = vdwg.mxu0
    %v1379 = vmax.f32 %v1373, 0.0
    %v1380 = vmax.f32 %v1375, 0.0
    %v1381 = vlaneseq
    %v1382 = vshrl.u32 %v1381, 7
    %v1383 = vsub.s32 2, %v1382
    %v1384 = vrot.slane %v92, %v1383
    %v1385 = vlaneseq
    %v1386 = vshrl.u32 %v1385, 7
    %v1387 = vsub.s32 2, %v1386
    %v1388 = vrot.slane %v93, %v1387
    %v1389 = vmul.f32 %v1379, %v1384
    %v1390 = vmul.f32 %v1380, %v1388
    %v1391 = vadd.f32 %v1389, %v1390
    %1392 = vadd.xlane.f32.xlu0 %v1391
    %v1393 = vpop.xlane.xlu0 %1392
    %v1394 = vlaneseq
    %v1395 = vshrl.u32 %v1394, 7
    %v1396 = vsub.s32 7, %v1395
    %v1397 = vrot.slane %v90, %v1396
    %v1398 = vadd.f32 %v1393, %v1397
    %vm1399 = vcmask 7168
    %1400 = vst.msk [vmem:[%s6] sm:$0xff] %vm1399, %v1398
    // Predicated region
    $region18: #{tpu_custom_call.1} parent=1 // pred_check
      _
    $region19: #{tpu_custom_call.1} parent=1 // pred_check_branch
      %1402 = sbr.rel (0) target = $region21
    $region20: #{tpu_custom_call.1} parent=1 // pred_region
      _
    $region21: #{tpu_custom_call.1} parent=1 // pred_fallthru
      _
    // Predicated region
    $region22: #{tpu_custom_call.1} parent=1 // pred_check
      _
    $region23: #{tpu_custom_call.1} parent=1 // pred_check_branch
      %1404 = sbr.rel (0) target = $region25
    $region24: #{tpu_custom_call.1} parent=1 // pred_region
      _
    $region25: #{tpu_custom_call.1} parent=1 // pred_fallthru
      _
  %1405 = vsyncmov [#allocation4]
  %s1406 = vpop.sfrf %1405
  %p1407 = scmp.eq.s32.totalorder %s1406, 0
  %p1408 = pneg %p1407
  %1410 = shalt.err (%p1408)
  %s1411 = scalar_lea.sflag [#allocation4], 1
  %1412 = vsyncmov %s1411
  %s1413 = vpop.sfrf %1412
  %p1414 = scmp.eq.s32.totalorder %s1413, 0
  %p1415 = pneg %p1414
  %1417 = shalt.err (%p1415)

</llo_original>
